<compile_context>
chip_gen: v7x
topology: tpu7x:2x2x1
jax: 0.10.0
libtpu: 0.0.40
codegen_flags: <defaults>
</compile_context>

<pallas_src>
import functools

import jax
import jax.numpy as jnp
from jax import lax
from jax.experimental import pallas as pl
from jax.experimental.pallas import tpu as pltpu


def _round_up(x, m):
    return (x + m - 1) // m * m


def _sigmoid(z):
    # sigmoid(z) = 0.5 * (1 + tanh(z/2)): one EUP push instead of exp + recip.
    return 0.5 * (1.0 + jnp.tanh(0.5 * z))


def _default_batch_tile(bp):
    """Prefer >=2 batch tiles when padded batch allows it (v7x: 2 TCs/chip)."""
    m = bp // 8
    if m <= 1:
        return bp
    best = 1
    for d in range(1, m):          # largest proper divisor of m
        if m % d == 0:
            best = d
    return 8 * best


def _pick_unroll(tt, bb, hp):
    """Largest divisor of tt whose unrolled live gate values (~bb*4*hp f32 per
    step) fit in about half of the 64-vreg (256 KiB) register file."""
    budget = 128 * 1024
    per_step = max(bb * 4 * hp * 4, 1)
    cap = max(1, budget // per_step)
    u = 1
    for d in range(1, tt + 1):
        if tt % d == 0 and d <= cap:
            u = d
    return u


# -----------------------------------------------------------------------------
# One-time parameter preparation (hoisted out of the per-call path).
# PyTorch layout: w_ih (4H, F*s), w_hh (4H, H), biases (4H,), gate order ifgo.
# Prepared layout: gate order [i|f|o|g], each gate block lane-padded to Hp,
# weights transposed for x@W^T / h@W^T, stored bf16; bias f32.
# -----------------------------------------------------------------------------
def prepare_lstm_params(w_ih, w_hh, b_ih, b_hh, stack_rate):
    four_h, d_in = w_ih.shape
    h = four_h // 4
    hp = _round_up(h, 128)          # lane-align each gate block
    fp = _round_up(d_in, 128)       # lane-dense stacked-feature (K) dim

    order = jnp.array([0, 1, 3, 2])  # i, f, g, o  ->  i, f, o, g

    # W_ih^T: (d_in, 4H) -> (Fp, 4*Hp), columns = [i|f|o|g] blocks.
    wih = w_ih.reshape(4, h, d_in)[order]
    wih = jnp.pad(wih, ((0, 0), (0, hp - h), (0, fp - d_in)))
    wih = jnp.transpose(wih, (2, 0, 1)).reshape(fp, 4 * hp).astype(jnp.bfloat16)

    # W_hh^T: (H, 4H) -> (Hp, 4*Hp)
    whh = w_hh.reshape(4, h, h)[order]
    whh = jnp.pad(whh, ((0, 0), (0, hp - h), (0, hp - h)))
    whh = jnp.transpose(whh, (2, 0, 1)).reshape(hp, 4 * hp).astype(jnp.bfloat16)

    # bias: zero-padded gate blocks keep padded hidden units exactly zero
    # (i=f=o=0.5, g=0 with zero state => state stays 0).
    bias = (b_ih + b_hh).reshape(4, h)[order]
    bias = jnp.pad(bias, ((0, 0), (0, hp - h)))
    bias = bias.reshape(1, 4 * hp).astype(jnp.float32)

    return dict(wih=wih, whh=whh, bias=bias, hidden=h, in_feat=d_in,
                hidden_pad=hp, feat_pad=fp, stack_rate=stack_rate)


# -----------------------------------------------------------------------------
# Pallas kernel: one grid step = one (batch-tile, time-block).  The tt stacked
# timesteps of the block run inside the kernel; h/c live in f32 VMEM scratch
# and persist across time blocks.  The x projection for the whole block is
# done once before the recurrent loop.
# -----------------------------------------------------------------------------
def _lstm_kernel(x_ref, h0_ref, c0_ref, wih_ref, whh_ref, b_ref,
                 y_ref, hn_ref, cn_ref,
                 h_sc, c_sc, gx_sc,
                 *, h_pad, seq_len, mask_tail, unroll):
    t_blk = pl.program_id(1)
    tt, bb, fp = x_ref.shape
    hp = h_pad

    @pl.when(t_blk == 0)
    def _init():
        h_sc[...] = h0_ref[...].astype(jnp.float32)
        c_sc[...] = c0_ref[...].astype(jnp.float32)

    # --- hoisted input projection: one big-M MXU matmul per time block ------
    # (tt*bb, Fp) @ (Fp, 4*Hp) with bias folded in (single broadcast / block).
    x2d = x_ref[...].reshape(tt * bb, fp).astype(jnp.bfloat16)
    gx = jnp.dot(x2d, wih_ref[...], preferred_element_type=jnp.float32)
    gx = gx + b_ref[...]
    gx_sc[...] = gx.reshape(tt, bb, 4 * hp)

    whh = whh_ref[...]                                  # (Hp, 4*Hp) bf16

    def step(i, carry):
        h_prev = h_sc[...]                              # (bb, Hp) f32
        c_prev = c_sc[...]

        # only the h @ Whh^T matmul remains on the serial h->h critical path
        gates = gx_sc[i] + jnp.dot(h_prev.astype(jnp.bfloat16), whh,
                                   preferred_element_type=jnp.float32)

        # gate order [i | f | o | g]: three sigmoids share one tanh launch
        sig = _sigmoid(gates[:, :3 * hp])
        i_g = sig[:, 0 * hp:1 * hp]
        f_g = sig[:, 1 * hp:2 * hp]
        o_g = sig[:, 2 * hp:3 * hp]
        g_g = jnp.tanh(gates[:, 3 * hp:4 * hp])

        c_new = f_g * c_prev + i_g * g_g
        h_new = o_g * jnp.tanh(c_new)

        if mask_tail:
            # padded tail timesteps (T_stk not a multiple of tt): freeze state
            valid = (t_blk * tt + i) < seq_len
            c_new = jnp.where(valid, c_new, c_prev)
            h_new = jnp.where(valid, h_new, h_prev)

        h_sc[...] = h_new
        c_sc[...] = c_new
        y_ref[i] = h_new.astype(y_ref.dtype)
        return carry

    lax.fori_loop(0, tt, step, 0, unroll=unroll)

    # final states: write once, on the last time block only.
    @pl.when(t_blk == pl.num_programs(1) - 1)
    def _final():
        hn_ref[...] = h_sc[...]
        cn_ref[...] = c_sc[...]


def _lstm_forward(x, h0, c0, prepared, *, time_block=None, batch_tile=None,
                  out_dtype=None):
    """x: (T, B, F) time-major (unstacked).  Returns (y (T//s, B, H), h_n, c_n)."""
    t_in, b, f_raw = x.shape
    s = prepared["stack_rate"]
    h = prepared["hidden"]
    hp = prepared["hidden_pad"]
    fp = prepared["feat_pad"]
    if f_raw * s != prepared["in_feat"]:
        raise ValueError("feature dim mismatch with prepared params")
    if t_in % s:
        raise ValueError("seq_len must be divisible by stack_rate "
                         "(the PyTorch reshape has the same requirement)")
    t_stk = t_in // s

    # time-stacking (T, B, F) -> (T//s, B, F*s); same element order as the
    # PyTorch transpose/reshape/transpose.  x is the smallest tensor, so this
    # one-time HBM relayout is negligible and buys a lane-dense K dimension.
    if s != 1:
        xs = jnp.transpose(x, (1, 0, 2)).reshape(b, t_stk, f_raw * s)
        xs = jnp.transpose(xs, (1, 0, 2))
    else:
        xs = x

    out_dtype = x.dtype if out_dtype is None else out_dtype

    bp = _round_up(b, 8)
    bb = batch_tile if batch_tile is not None else _default_batch_tile(bp)
    if bb % 8 or bp % bb:
        raise ValueError("batch_tile must be a multiple of 8 dividing padded B")
    tt = time_block if time_block is not None else min(16, t_stk)
    tt = max(1, min(tt, t_stk))
    t_pad = _round_up(t_stk, tt)
    nb, nt = bp // bb, t_pad // tt
    mask_tail = t_pad != t_stk

    xp = jnp.pad(xs, ((0, t_pad - t_stk), (0, bp - b), (0, fp - f_raw * s)))
    h0p = jnp.pad(h0.astype(jnp.float32), ((0, bp - b), (0, hp - h)))
    c0p = jnp.pad(c0.astype(jnp.float32), ((0, bp - b), (0, hp - h)))

    unroll = _pick_unroll(tt, bb, hp)
    kernel = functools.partial(_lstm_kernel, h_pad=hp, seq_len=t_stk,
                               mask_tail=mask_tail, unroll=unroll)

    out_shapes = (
        jax.ShapeDtypeStruct((t_pad, bp, hp), out_dtype),    # output
        jax.ShapeDtypeStruct((bp, hp), jnp.float32),         # h_n
        jax.ShapeDtypeStruct((bp, hp), jnp.float32),         # c_n
    )

    grid_spec = pltpu.PrefetchScalarGridSpec(
        num_scalar_prefetch=0,
        grid=(nb, nt),                                       # (batch, time)
        in_specs=[
            pl.BlockSpec((tt, bb, fp), lambda bi, ti: (ti, bi, 0)),     # x
            pl.BlockSpec((bb, hp), lambda bi, ti: (bi, 0)),             # h0
            pl.BlockSpec((bb, hp), lambda bi, ti: (bi, 0)),             # c0
            # TODO(synk): grid-invariant weights could be single-buffered
            # (pipeline_mode=pl.Buffered(1)) to save VMEM on v7x (64 MiB).
            pl.BlockSpec((fp, 4 * hp), lambda bi, ti: (0, 0)),          # Wih^T
            pl.BlockSpec((hp, 4 * hp), lambda bi, ti: (0, 0)),          # Whh^T
            pl.BlockSpec((1, 4 * hp), lambda bi, ti: (0, 0)),           # bias
        ],
        out_specs=(
            pl.BlockSpec((tt, bb, hp), lambda bi, ti: (ti, bi, 0)),     # y
            pl.BlockSpec((bb, hp), lambda bi, ti: (bi, 0)),             # h_n
            pl.BlockSpec((bb, hp), lambda bi, ti: (bi, 0)),             # c_n
        ),
        scratch_shapes=[
            pltpu.VMEM((bb, hp), jnp.float32),           # h state
            pltpu.VMEM((bb, hp), jnp.float32),           # c state
            pltpu.VMEM((tt, bb, 4 * hp), jnp.float32),   # hoisted x-projection
        ],
    )

    # VMEM accounting: raise the scoped limit only when the default would be
    # exceeded (v5e default 16 MiB, v6e/v7x 32 MiB).
    x_bytes = tt * bb * fp * jnp.dtype(x.dtype).itemsize
    y_bytes = tt * bb * hp * jnp.dtype(out_dtype).itemsize
    st_bytes = bb * hp * 4
    w_bytes = (fp * 4 * hp + hp * 4 * hp) * 2 + 4 * hp * 4
    scr_bytes = 2 * bb * hp * 4 + tt * bb * 4 * hp * 4
    vmem_est = 2 * (x_bytes + y_bytes) + 8 * st_bytes + 2 * w_bytes + scr_bytes
    cp_kwargs = dict(dimension_semantics=("parallel", "arbitrary"))
    if vmem_est > 30 * (1 << 20):
        cp_kwargs["vmem_limit_bytes"] = int(vmem_est * 1.25)

    # batch tiles are independent -> "parallel" (shardable across v7x's 2 TCs);
    # time is the recurrence -> "arbitrary" (innermost).
    y, h_n, c_n = pl.pallas_call(
        kernel,
        out_shape=out_shapes,
        grid_spec=grid_spec,
        compiler_params=pltpu.CompilerParams(**cp_kwargs),
    )(xp, h0p, c0p, prepared["wih"], prepared["whh"], prepared["bias"])

    return y[:t_stk, :b, :h], h_n[:b, :h], c_n[:b, :h]


# -----------------------------------------------------------------------------
# pRNNLayer.forward
# -----------------------------------------------------------------------------
def prnn_layer_forward(inputs, states, lengths, prepared, stack_rate=1,
                       time_block=None, batch_tile=None, out_dtype=None):
    """inputs: (T, B, F) time-major. states: (h0, c0) each (1, B, H).
    lengths: (B,) int. Returns ((output, (h_n, c_n)), new_lengths)."""
    if stack_rate != 1:
        lengths = jnp.floor(
            jnp.maximum(lengths.astype(jnp.float32) / stack_rate, 1.0)
        ).astype(jnp.int32)

    h0, c0 = states
    y, h_n, c_n = _lstm_forward(inputs, h0[0], c0[0], prepared,
                                time_block=time_block, batch_tile=batch_tile,
                                out_dtype=out_dtype)
    return (y, (h_n[None], c_n[None])), lengths


# -----------------------------------------------------------------------------
# Pure-JAX reference (PyTorch semantics; same bf16 matmul operands for a tight
# numerical comparison).
# -----------------------------------------------------------------------------
def _lstm_reference(x, h0, c0, w_ih, w_hh, b_ih, b_hh, stack_rate):
    t, b, f = x.shape
    s = stack_rate
    if s != 1:
        xs = jnp.transpose(x, (1, 0, 2)).reshape(b, t // s, f * s)
        xs = jnp.transpose(xs, (1, 0, 2))
    else:
        xs = x
    h_dim = w_hh.shape[1]
    wih_t = jnp.transpose(w_ih).astype(jnp.bfloat16)
    whh_t = jnp.transpose(w_hh).astype(jnp.bfloat16)
    bias = (b_ih + b_hh).astype(jnp.float32)

    def step(carry, xt):
        h, c = carry
        g = (jnp.dot(xt.astype(jnp.bfloat16), wih_t,
                     preferred_element_type=jnp.float32)
             + jnp.dot(h.astype(jnp.bfloat16), whh_t,
                       preferred_element_type=jnp.float32)
             + bias)
        i = _sigmoid(g[:, 0 * h_dim:1 * h_dim])
        ff = _sigmoid(g[:, 1 * h_dim:2 * h_dim])
        gg = jnp.tanh(g[:, 2 * h_dim:3 * h_dim])
        o = _sigmoid(g[:, 3 * h_dim:4 * h_dim])
        c = ff * c + i * gg
        h = o * jnp.tanh(c)
        return (h, c), h

    (h_t, c_t), ys = lax.scan(step, (h0.astype(jnp.float32),
                                     c0.astype(jnp.float32)), xs)
    return ys.astype(x.dtype), h_t, c_t


def init_lstm_params(key, input_size, hidden_size):
    k = 1.0 / jnp.sqrt(hidden_size)
    ks = jax.random.split(key, 4)
    w_ih = jax.random.uniform(ks[0], (4 * hidden_size, input_size),
                              jnp.float32, -k, k)
    w_hh = jax.random.uniform(ks[1], (4 * hidden_size, hidden_size),
                              jnp.float32, -k, k)
    b_ih = jax.random.uniform(ks[2], (4 * hidden_size,), jnp.float32, -k, k)
    b_hh = jax.random.uniform(ks[3], (4 * hidden_size,), jnp.float32, -k, k)
    return w_ih, w_hh, b_ih, b_hh


def _run_case(key, input_size, hidden_size, stack_rate, seq_len, batch,
              lengths, time_block=None, tol=1e-3):
    k_x, k_h, k_c, k_p = jax.random.split(key, 4)
    inputs = jax.random.normal(k_x, (seq_len, batch, input_size), jnp.float32)
    h0 = jax.random.normal(k_h, (1, batch, hidden_size), jnp.float32)
    c0 = jax.random.normal(k_c, (1, batch, hidden_size), jnp.float32)
    lengths = jnp.asarray(lengths, dtype=jnp.int32)

    # the wrapped LSTM sees input_size * stack_rate features
    w_ih, w_hh, b_ih, b_hh = init_lstm_params(
        k_p, input_size * stack_rate, hidden_size)
    prepared = prepare_lstm_params(w_ih, w_hh, b_ih, b_hh, stack_rate)

    (out, (h_n, c_n)), new_lengths = prnn_layer_forward(
        inputs, (h0, c0), lengths, prepared, stack_rate=stack_rate,
        time_block=time_block)
    jax.block_until_ready((out, h_n, c_n, new_lengths))

    t_stk = seq_len // stack_rate
    assert out.shape == (t_stk, batch, hidden_size)
    assert h_n.shape == (1, batch, hidden_size)
    assert c_n.shape == (1, batch, hidden_size)
    assert new_lengths.shape == (batch,)

    y_ref, h_ref, c_ref = _lstm_reference(
        inputs, h0[0], c0[0], w_ih, w_hh, b_ih, b_hh, stack_rate)
    if stack_rate != 1:
        len_ref = jnp.floor(jnp.maximum(
            lengths.astype(jnp.float32) / stack_rate, 1.0)).astype(jnp.int32)
    else:
        len_ref = lengths

    assert float(jnp.max(jnp.abs(out - y_ref))) < tol
    assert float(jnp.max(jnp.abs(h_n[0] - h_ref))) < tol
    assert float(jnp.max(jnp.abs(c_n[0] - c_ref))) < tol
    assert bool(jnp.all(new_lengths == len_ref))


if __name__ == "__main__":
    key = jax.random.PRNGKey(0)
    k1, k2 = jax.random.split(key)

    # pRNNLayer(rnn=nn.LSTM, input_size=4, hidden_size=32, stack_rate=2)
    _run_case(k1, input_size=4, hidden_size=32, stack_rate=2,
              seq_len=8, batch=2, lengths=[8, 5])

    # awkward shapes: ragged time tail (t_stk=7, time_block=4 -> 1 padded
    # step), padded batch (5 -> 8), stack_rate=3.
    _run_case(k2, input_size=6, hidden_size=48, stack_rate=3,
              seq_len=21, batch=5, lengths=[21, 15, 9, 3, 1], time_block=4)

    print("KERNEL_OK")
</pallas_src>

<mosaic_0001>
module attributes {stable_mosaic.version = 11 : i64} {
  func.func @_lstm_kernel(%arg0: i32, %arg1: i32, %arg2: memref<4x8x128xf32, #tpu.memory_space<vmem>>, %arg3: memref<8x128xf32, #tpu.memory_space<vmem>>, %arg4: memref<8x128xf32, #tpu.memory_space<vmem>>, %arg5: memref<128x512xbf16, #tpu.memory_space<vmem>>, %arg6: memref<128x512xbf16, #tpu.memory_space<vmem>>, %arg7: memref<1x512xf32, #tpu.memory_space<vmem>>, %arg8: memref<4x8x128xf32, #tpu.memory_space<vmem>>, %arg9: memref<8x128xf32, #tpu.memory_space<vmem>>, %arg10: memref<8x128xf32, #tpu.memory_space<vmem>>, %arg11: memref<8x128xf32, #tpu.memory_space<vmem>>, %arg12: memref<8x128xf32, #tpu.memory_space<vmem>>, %arg13: memref<4x8x512xf32, #tpu.memory_space<vmem>>) attributes {dimension_semantics = [#tpu.dimension_semantics<parallel>, #tpu.dimension_semantics<arbitrary>], iteration_bounds = array<i64: 1, 1>, scalar_prefetch = 0 : i64, scratch_operands = 3 : i64, tpu.core_type = #tpu.core_type<tc>, window_params = [{transform_indices = @transform_0, window_bounds = array<i64: 4, 8, 128>}, {transform_indices = @transform_1, window_bounds = array<i64: 8, 128>}, {transform_indices = @transform_2, window_bounds = array<i64: 8, 128>}, {pipeline_mode = #tpu.pipeline_mode<synchronous>, transform_indices = @transform_3, window_bounds = array<i64: 128, 512>}, {pipeline_mode = #tpu.pipeline_mode<synchronous>, transform_indices = @transform_4, window_bounds = array<i64: 128, 512>}, {pipeline_mode = #tpu.pipeline_mode<synchronous>, transform_indices = @transform_5, window_bounds = array<i64: 1, 512>}, {transform_indices = @transform_6, window_bounds = array<i64: 4, 8, 128>}, {transform_indices = @transform_7, window_bounds = array<i64: 8, 128>}, {transform_indices = @transform_8, window_bounds = array<i64: 8, 128>}]} {
    %c0_i32 = arith.constant 0 : i32
    %0 = arith.cmpi eq, %arg1, %c0_i32 : i32
    %1 = arith.extui %0 : i1 to i32
    %c0_i32_0 = arith.constant 0 : i32
    %2 = arith.cmpi ne, %1, %c0_i32_0 : i32
    scf.if %2 {
      %c0_79 = arith.constant 0 : index
      %c0_80 = arith.constant 0 : index
      %145 = vector.load %arg3[%c0_79, %c0_80] : memref<8x128xf32, #tpu.memory_space<vmem>>, vector<8x128xf32>
      %c0_81 = arith.constant 0 : index
      %c0_82 = arith.constant 0 : index
      %146 = vector.load %arg11[%c0_81, %c0_82] : memref<8x128xf32, #tpu.memory_space<vmem>>, vector<8x128xf32>
      tpu.vector_store %arg11[%c0_81, %c0_82], %145 {strides = array<i32>} : memref<8x128xf32, #tpu.memory_space<vmem>>, vector<8x128xf32>,
      %c0_83 = arith.constant 0 : index
      %c0_84 = arith.constant 0 : index
      %147 = vector.load %arg4[%c0_83, %c0_84] : memref<8x128xf32, #tpu.memory_space<vmem>>, vector<8x128xf32>
      %c0_85 = arith.constant 0 : index
      %c0_86 = arith.constant 0 : index
      %148 = vector.load %arg12[%c0_85, %c0_86] : memref<8x128xf32, #tpu.memory_space<vmem>>, vector<8x128xf32>
      tpu.vector_store %arg12[%c0_85, %c0_86], %147 {strides = array<i32>} : memref<8x128xf32, #tpu.memory_space<vmem>>, vector<8x128xf32>,
    } else {
    }
    %c0 = arith.constant 0 : index
    %c0_1 = arith.constant 0 : index
    %c0_2 = arith.constant 0 : index
    %3 = vector.load %arg2[%c0, %c0_1, %c0_2] : memref<4x8x128xf32, #tpu.memory_space<vmem>>, vector<4x8x128xf32>
    %4 = vector.shape_cast %3 : vector<4x8x128xf32> to vector<32x128xf32>
    %5 = arith.truncf %4 : vector<32x128xf32> to vector<32x128xbf16>
    %c0_3 = arith.constant 0 : index
    %c0_4 = arith.constant 0 : index
    %6 = vector.load %arg5[%c0_3, %c0_4] : memref<128x512xbf16, #tpu.memory_space<vmem>>, vector<128x512xbf16>
    %cst = arith.constant dense<0.000000e+00> : vector<32x512xf32>
    %7 = tpu.matmul %5, %6, %cst {dimension_numbers = #tpu.dot_dimension_numbers<[1], [0], [0], [1], [0, 0, 1, 1], [], []>} : vector<32x128xbf16>, vector<128x512xbf16>, vector<32x512xf32> -> vector<32x512xf32>
    %c0_5 = arith.constant 0 : index
    %c0_6 = arith.constant 0 : index
    %8 = vector.load %arg7[%c0_5, %c0_6] : memref<1x512xf32, #tpu.memory_space<vmem>>, vector<1x512xf32>
    %9 = vector.broadcast %8 : vector<1x512xf32> to vector<32x512xf32>
    %10 = arith.addf %7, %9 : vector<32x512xf32>
    %11 = vector.shape_cast %10 : vector<32x512xf32> to vector<4x8x512xf32>
    %c0_7 = arith.constant 0 : index
    %c0_8 = arith.constant 0 : index
    %c0_9 = arith.constant 0 : index
    %12 = vector.load %arg13[%c0_7, %c0_8, %c0_9] : memref<4x8x512xf32, #tpu.memory_space<vmem>>, vector<4x8x512xf32>
    tpu.vector_store %arg13[%c0_7, %c0_8, %c0_9], %11 {strides = array<i32>} : memref<4x8x512xf32, #tpu.memory_space<vmem>>, vector<4x8x512xf32>,
    %c0_10 = arith.constant 0 : index
    %c0_11 = arith.constant 0 : index
    %13 = vector.load %arg6[%c0_10, %c0_11] : memref<128x512xbf16, #tpu.memory_space<vmem>>, vector<128x512xbf16>
    %c0_i32_12 = arith.constant 0 : i32
    %c0_13 = arith.constant 0 : index
    %c0_14 = arith.constant 0 : index
    %14 = vector.load %arg11[%c0_13, %c0_14] : memref<8x128xf32, #tpu.memory_space<vmem>>, vector<8x128xf32>
    %c0_15 = arith.constant 0 : index
    %c0_16 = arith.constant 0 : index
    %15 = vector.load %arg12[%c0_15, %c0_16] : memref<8x128xf32, #tpu.memory_space<vmem>>, vector<8x128xf32>
    %16 = arith.index_cast %c0_i32_12 : i32 to index
    %c0_17 = arith.constant 0 : index
    %c0_18 = arith.constant 0 : index
    %17 = vector.load %arg13[%16, %c0_17, %c0_18] : memref<4x8x512xf32, #tpu.memory_space<vmem>>, vector<1x8x512xf32>
    %18 = vector.shape_cast %17 : vector<1x8x512xf32> to vector<8x512xf32>
    %19 = arith.truncf %14 : vector<8x128xf32> to vector<8x128xbf16>
    %cst_19 = arith.constant dense<0.000000e+00> : vector<8x512xf32>
    %20 = tpu.matmul %19, %13, %cst_19 {dimension_numbers = #tpu.dot_dimension_numbers<[1], [0], [0], [1], [0, 0, 1, 1], [], []>} : vector<8x128xbf16>, vector<128x512xbf16>, vector<8x512xf32> -> vector<8x512xf32>
    %21 = arith.addf %18, %20 : vector<8x512xf32>
    %22 = vector.extract_strided_slice %21 {offsets = [0, 0], sizes = [8, 384], strides = [1, 1]} : vector<8x512xf32> to vector<8x384xf32>
    %cst_20 = arith.constant 5.000000e-01 : f32
    %23 = vector.broadcast %cst_20 : f32 to vector<8x384xf32>
    %24 = arith.mulf %23, %22 : vector<8x384xf32>
    %25 = math.tanh %24 : vector<8x384xf32>
    %cst_21 = arith.constant 1.000000e+00 : f32
    %26 = vector.broadcast %cst_21 : f32 to vector<8x384xf32>
    %27 = arith.addf %26, %25 : vector<8x384xf32>
    %cst_22 = arith.constant 5.000000e-01 : f32
    %28 = vector.broadcast %cst_22 : f32 to vector<8x384xf32>
    %29 = arith.mulf %28, %27 : vector<8x384xf32>
    %30 = vector.extract_strided_slice %29 {offsets = [0, 0], sizes = [8, 128], strides = [1, 1]} : vector<8x384xf32> to vector<8x128xf32>
    %31 = vector.extract_strided_slice %29 {offsets = [0, 128], sizes = [8, 128], strides = [1, 1]} : vector<8x384xf32> to vector<8x128xf32>
    %32 = vector.extract_strided_slice %29 {offsets = [0, 256], sizes = [8, 128], strides = [1, 1]} : vector<8x384xf32> to vector<8x128xf32>
    %33 = vector.extract_strided_slice %21 {offsets = [0, 384], sizes = [8, 128], strides = [1, 1]} : vector<8x512xf32> to vector<8x128xf32>
    %34 = math.tanh %33 : vector<8x128xf32>
    %35 = arith.mulf %31, %15 : vector<8x128xf32>
    %36 = arith.mulf %30, %34 : vector<8x128xf32>
    %37 = arith.addf %35, %36 : vector<8x128xf32>
    %38 = math.tanh %37 : vector<8x128xf32>
    %39 = arith.mulf %32, %38 : vector<8x128xf32>
    %c0_23 = arith.constant 0 : index
    %c0_24 = arith.constant 0 : index
    %40 = vector.load %arg11[%c0_23, %c0_24] : memref<8x128xf32, #tpu.memory_space<vmem>>, vector<8x128xf32>
    tpu.vector_store %arg11[%c0_23, %c0_24], %39 {strides = array<i32>} : memref<8x128xf32, #tpu.memory_space<vmem>>, vector<8x128xf32>,
    %c0_25 = arith.constant 0 : index
    %c0_26 = arith.constant 0 : index
    %41 = vector.load %arg12[%c0_25, %c0_26] : memref<8x128xf32, #tpu.memory_space<vmem>>, vector<8x128xf32>
    tpu.vector_store %arg12[%c0_25, %c0_26], %37 {strides = array<i32>} : memref<8x128xf32, #tpu.memory_space<vmem>>, vector<8x128xf32>,
    %42 = arith.index_cast %c0_i32_12 : i32 to index
    %c0_27 = arith.constant 0 : index
    %c0_28 = arith.constant 0 : index
    %43 = vector.load %arg8[%42, %c0_27, %c0_28] : memref<4x8x128xf32, #tpu.memory_space<vmem>>, vector<1x8x128xf32>
    %44 = vector.shape_cast %43 : vector<1x8x128xf32> to vector<8x128xf32>
    %45 = vector.shape_cast %39 : vector<8x128xf32> to vector<1x8x128xf32>
    tpu.vector_store %arg8[%42, %c0_27, %c0_28], %45 {strides = array<i32>} : memref<4x8x128xf32, #tpu.memory_space<vmem>>, vector<1x8x128xf32>,
    %c1_i32 = arith.constant 1 : i32
    %c0_29 = arith.constant 0 : index
    %c0_30 = arith.constant 0 : index
    %46 = vector.load %arg11[%c0_29, %c0_30] : memref<8x128xf32, #tpu.memory_space<vmem>>, vector<8x128xf32>
    %c0_31 = arith.constant 0 : index
    %c0_32 = arith.constant 0 : index
    %47 = vector.load %arg12[%c0_31, %c0_32] : memref<8x128xf32, #tpu.memory_space<vmem>>, vector<8x128xf32>
    %48 = arith.index_cast %c1_i32 : i32 to index
    %c0_33 = arith.constant 0 : index
    %c0_34 = arith.constant 0 : index
    %49 = vector.load %arg13[%48, %c0_33, %c0_34] : memref<4x8x512xf32, #tpu.memory_space<vmem>>, vector<1x8x512xf32>
    %50 = vector.shape_cast %49 : vector<1x8x512xf32> to vector<8x512xf32>
    %51 = arith.truncf %46 : vector<8x128xf32> to vector<8x128xbf16>
    %cst_35 = arith.constant dense<0.000000e+00> : vector<8x512xf32>
    %52 = tpu.matmul %51, %13, %cst_35 {dimension_numbers = #tpu.dot_dimension_numbers<[1], [0], [0], [1], [0, 0, 1, 1], [], []>} : vector<8x128xbf16>, vector<128x512xbf16>, vector<8x512xf32> -> vector<8x512xf32>
    %53 = arith.addf %50, %52 : vector<8x512xf32>
    %54 = vector.extract_strided_slice %53 {offsets = [0, 0], sizes = [8, 384], strides = [1, 1]} : vector<8x512xf32> to vector<8x384xf32>
    %cst_36 = arith.constant 5.000000e-01 : f32
    %55 = vector.broadcast %cst_36 : f32 to vector<8x384xf32>
    %56 = arith.mulf %55, %54 : vector<8x384xf32>
    %57 = math.tanh %56 : vector<8x384xf32>
    %cst_37 = arith.constant 1.000000e+00 : f32
    %58 = vector.broadcast %cst_37 : f32 to vector<8x384xf32>
    %59 = arith.addf %58, %57 : vector<8x384xf32>
    %cst_38 = arith.constant 5.000000e-01 : f32
    %60 = vector.broadcast %cst_38 : f32 to vector<8x384xf32>
    %61 = arith.mulf %60, %59 : vector<8x384xf32>
    %62 = vector.extract_strided_slice %61 {offsets = [0, 0], sizes = [8, 128], strides = [1, 1]} : vector<8x384xf32> to vector<8x128xf32>
    %63 = vector.extract_strided_slice %61 {offsets = [0, 128], sizes = [8, 128], strides = [1, 1]} : vector<8x384xf32> to vector<8x128xf32>
    %64 = vector.extract_strided_slice %61 {offsets = [0, 256], sizes = [8, 128], strides = [1, 1]} : vector<8x384xf32> to vector<8x128xf32>
    %65 = vector.extract_strided_slice %53 {offsets = [0, 384], sizes = [8, 128], strides = [1, 1]} : vector<8x512xf32> to vector<8x128xf32>
    %66 = math.tanh %65 : vector<8x128xf32>
    %67 = arith.mulf %63, %47 : vector<8x128xf32>
    %68 = arith.mulf %62, %66 : vector<8x128xf32>
    %69 = arith.addf %67, %68 : vector<8x128xf32>
    %70 = math.tanh %69 : vector<8x128xf32>
    %71 = arith.mulf %64, %70 : vector<8x128xf32>
    %c0_39 = arith.constant 0 : index
    %c0_40 = arith.constant 0 : index
    %72 = vector.load %arg11[%c0_39, %c0_40] : memref<8x128xf32, #tpu.memory_space<vmem>>, vector<8x128xf32>
    tpu.vector_store %arg11[%c0_39, %c0_40], %71 {strides = array<i32>} : memref<8x128xf32, #tpu.memory_space<vmem>>, vector<8x128xf32>,
    %c0_41 = arith.constant 0 : index
    %c0_42 = arith.constant 0 : index
    %73 = vector.load %arg12[%c0_41, %c0_42] : memref<8x128xf32, #tpu.memory_space<vmem>>, vector<8x128xf32>
    tpu.vector_store %arg12[%c0_41, %c0_42], %69 {strides = array<i32>} : memref<8x128xf32, #tpu.memory_space<vmem>>, vector<8x128xf32>,
    %74 = arith.index_cast %c1_i32 : i32 to index
    %c0_43 = arith.constant 0 : index
    %c0_44 = arith.constant 0 : index
    %75 = vector.load %arg8[%74, %c0_43, %c0_44] : memref<4x8x128xf32, #tpu.memory_space<vmem>>, vector<1x8x128xf32>
    %76 = vector.shape_cast %75 : vector<1x8x128xf32> to vector<8x128xf32>
    %77 = vector.shape_cast %71 : vector<8x128xf32> to vector<1x8x128xf32>
    tpu.vector_store %arg8[%74, %c0_43, %c0_44], %77 {strides = array<i32>} : memref<4x8x128xf32, #tpu.memory_space<vmem>>, vector<1x8x128xf32>,
    %c2_i32 = arith.constant 2 : i32
    %c0_45 = arith.constant 0 : index
    %c0_46 = arith.constant 0 : index
    %78 = vector.load %arg11[%c0_45, %c0_46] : memref<8x128xf32, #tpu.memory_space<vmem>>, vector<8x128xf32>
    %c0_47 = arith.constant 0 : index
    %c0_48 = arith.constant 0 : index
    %79 = vector.load %arg12[%c0_47, %c0_48] : memref<8x128xf32, #tpu.memory_space<vmem>>, vector<8x128xf32>
    %80 = arith.index_cast %c2_i32 : i32 to index
    %c0_49 = arith.constant 0 : index
    %c0_50 = arith.constant 0 : index
    %81 = vector.load %arg13[%80, %c0_49, %c0_50] : memref<4x8x512xf32, #tpu.memory_space<vmem>>, vector<1x8x512xf32>
    %82 = vector.shape_cast %81 : vector<1x8x512xf32> to vector<8x512xf32>
    %83 = arith.truncf %78 : vector<8x128xf32> to vector<8x128xbf16>
    %cst_51 = arith.constant dense<0.000000e+00> : vector<8x512xf32>
    %84 = tpu.matmul %83, %13, %cst_51 {dimension_numbers = #tpu.dot_dimension_numbers<[1], [0], [0], [1], [0, 0, 1, 1], [], []>} : vector<8x128xbf16>, vector<128x512xbf16>, vector<8x512xf32> -> vector<8x512xf32>
    %85 = arith.addf %82, %84 : vector<8x512xf32>
    %86 = vector.extract_strided_slice %85 {offsets = [0, 0], sizes = [8, 384], strides = [1, 1]} : vector<8x512xf32> to vector<8x384xf32>
    %cst_52 = arith.constant 5.000000e-01 : f32
    %87 = vector.broadcast %cst_52 : f32 to vector<8x384xf32>
    %88 = arith.mulf %87, %86 : vector<8x384xf32>
    %89 = math.tanh %88 : vector<8x384xf32>
    %cst_53 = arith.constant 1.000000e+00 : f32
    %90 = vector.broadcast %cst_53 : f32 to vector<8x384xf32>
    %91 = arith.addf %90, %89 : vector<8x384xf32>
    %cst_54 = arith.constant 5.000000e-01 : f32
    %92 = vector.broadcast %cst_54 : f32 to vector<8x384xf32>
    %93 = arith.mulf %92, %91 : vector<8x384xf32>
    %94 = vector.extract_strided_slice %93 {offsets = [0, 0], sizes = [8, 128], strides = [1, 1]} : vector<8x384xf32> to vector<8x128xf32>
    %95 = vector.extract_strided_slice %93 {offsets = [0, 128], sizes = [8, 128], strides = [1, 1]} : vector<8x384xf32> to vector<8x128xf32>
    %96 = vector.extract_strided_slice %93 {offsets = [0, 256], sizes = [8, 128], strides = [1, 1]} : vector<8x384xf32> to vector<8x128xf32>
    %97 = vector.extract_strided_slice %85 {offsets = [0, 384], sizes = [8, 128], strides = [1, 1]} : vector<8x512xf32> to vector<8x128xf32>
    %98 = math.tanh %97 : vector<8x128xf32>
    %99 = arith.mulf %95, %79 : vector<8x128xf32>
    %100 = arith.mulf %94, %98 : vector<8x128xf32>
    %101 = arith.addf %99, %100 : vector<8x128xf32>
    %102 = math.tanh %101 : vector<8x128xf32>
    %103 = arith.mulf %96, %102 : vector<8x128xf32>
    %c0_55 = arith.constant 0 : index
    %c0_56 = arith.constant 0 : index
    %104 = vector.load %arg11[%c0_55, %c0_56] : memref<8x128xf32, #tpu.memory_space<vmem>>, vector<8x128xf32>
    tpu.vector_store %arg11[%c0_55, %c0_56], %103 {strides = array<i32>} : memref<8x128xf32, #tpu.memory_space<vmem>>, vector<8x128xf32>,
    %c0_57 = arith.constant 0 : index
    %c0_58 = arith.constant 0 : index
    %105 = vector.load %arg12[%c0_57, %c0_58] : memref<8x128xf32, #tpu.memory_space<vmem>>, vector<8x128xf32>
    tpu.vector_store %arg12[%c0_57, %c0_58], %101 {strides = array<i32>} : memref<8x128xf32, #tpu.memory_space<vmem>>, vector<8x128xf32>,
    %106 = arith.index_cast %c2_i32 : i32 to index
    %c0_59 = arith.constant 0 : index
    %c0_60 = arith.constant 0 : index
    %107 = vector.load %arg8[%106, %c0_59, %c0_60] : memref<4x8x128xf32, #tpu.memory_space<vmem>>, vector<1x8x128xf32>
    %108 = vector.shape_cast %107 : vector<1x8x128xf32> to vector<8x128xf32>
    %109 = vector.shape_cast %103 : vector<8x128xf32> to vector<1x8x128xf32>
    tpu.vector_store %arg8[%106, %c0_59, %c0_60], %109 {strides = array<i32>} : memref<4x8x128xf32, #tpu.memory_space<vmem>>, vector<1x8x128xf32>,
    %c3_i32 = arith.constant 3 : i32
    %c0_61 = arith.constant 0 : index
    %c0_62 = arith.constant 0 : index
    %110 = vector.load %arg11[%c0_61, %c0_62] : memref<8x128xf32, #tpu.memory_space<vmem>>, vector<8x128xf32>
    %c0_63 = arith.constant 0 : index
    %c0_64 = arith.constant 0 : index
    %111 = vector.load %arg12[%c0_63, %c0_64] : memref<8x128xf32, #tpu.memory_space<vmem>>, vector<8x128xf32>
    %112 = arith.index_cast %c3_i32 : i32 to index
    %c0_65 = arith.constant 0 : index
    %c0_66 = arith.constant 0 : index
    %113 = vector.load %arg13[%112, %c0_65, %c0_66] : memref<4x8x512xf32, #tpu.memory_space<vmem>>, vector<1x8x512xf32>
    %114 = vector.shape_cast %113 : vector<1x8x512xf32> to vector<8x512xf32>
    %115 = arith.truncf %110 : vector<8x128xf32> to vector<8x128xbf16>
    %cst_67 = arith.constant dense<0.000000e+00> : vector<8x512xf32>
    %116 = tpu.matmul %115, %13, %cst_67 {dimension_numbers = #tpu.dot_dimension_numbers<[1], [0], [0], [1], [0, 0, 1, 1], [], []>} : vector<8x128xbf16>, vector<128x512xbf16>, vector<8x512xf32> -> vector<8x512xf32>
    %117 = arith.addf %114, %116 : vector<8x512xf32>
    %118 = vector.extract_strided_slice %117 {offsets = [0, 0], sizes = [8, 384], strides = [1, 1]} : vector<8x512xf32> to vector<8x384xf32>
    %cst_68 = arith.constant 5.000000e-01 : f32
    %119 = vector.broadcast %cst_68 : f32 to vector<8x384xf32>
    %120 = arith.mulf %119, %118 : vector<8x384xf32>
    %121 = math.tanh %120 : vector<8x384xf32>
    %cst_69 = arith.constant 1.000000e+00 : f32
    %122 = vector.broadcast %cst_69 : f32 to vector<8x384xf32>
    %123 = arith.addf %122, %121 : vector<8x384xf32>
    %cst_70 = arith.constant 5.000000e-01 : f32
    %124 = vector.broadcast %cst_70 : f32 to vector<8x384xf32>
    %125 = arith.mulf %124, %123 : vector<8x384xf32>
    %126 = vector.extract_strided_slice %125 {offsets = [0, 0], sizes = [8, 128], strides = [1, 1]} : vector<8x384xf32> to vector<8x128xf32>
    %127 = vector.extract_strided_slice %125 {offsets = [0, 128], sizes = [8, 128], strides = [1, 1]} : vector<8x384xf32> to vector<8x128xf32>
    %128 = vector.extract_strided_slice %125 {offsets = [0, 256], sizes = [8, 128], strides = [1, 1]} : vector<8x384xf32> to vector<8x128xf32>
    %129 = vector.extract_strided_slice %117 {offsets = [0, 384], sizes = [8, 128], strides = [1, 1]} : vector<8x512xf32> to vector<8x128xf32>
    %130 = math.tanh %129 : vector<8x128xf32>
    %131 = arith.mulf %127, %111 : vector<8x128xf32>
    %132 = arith.mulf %126, %130 : vector<8x128xf32>
    %133 = arith.addf %131, %132 : vector<8x128xf32>
    %134 = math.tanh %133 : vector<8x128xf32>
    %135 = arith.mulf %128, %134 : vector<8x128xf32>
    %c0_71 = arith.constant 0 : index
    %c0_72 = arith.constant 0 : index
    %136 = vector.load %arg11[%c0_71, %c0_72] : memref<8x128xf32, #tpu.memory_space<vmem>>, vector<8x128xf32>
    tpu.vector_store %arg11[%c0_71, %c0_72], %135 {strides = array<i32>} : memref<8x128xf32, #tpu.memory_space<vmem>>, vector<8x128xf32>,
    %c0_73 = arith.constant 0 : index
    %c0_74 = arith.constant 0 : index
    %137 = vector.load %arg12[%c0_73, %c0_74] : memref<8x128xf32, #tpu.memory_space<vmem>>, vector<8x128xf32>
    tpu.vector_store %arg12[%c0_73, %c0_74], %133 {strides = array<i32>} : memref<8x128xf32, #tpu.memory_space<vmem>>, vector<8x128xf32>,
    %138 = arith.index_cast %c3_i32 : i32 to index
    %c0_75 = arith.constant 0 : index
    %c0_76 = arith.constant 0 : index
    %139 = vector.load %arg8[%138, %c0_75, %c0_76] : memref<4x8x128xf32, #tpu.memory_space<vmem>>, vector<1x8x128xf32>
    %140 = vector.shape_cast %139 : vector<1x8x128xf32> to vector<8x128xf32>
    %141 = vector.shape_cast %135 : vector<8x128xf32> to vector<1x8x128xf32>
    tpu.vector_store %arg8[%138, %c0_75, %c0_76], %141 {strides = array<i32>} : memref<4x8x128xf32, #tpu.memory_space<vmem>>, vector<1x8x128xf32>,
    %c4_i32 = arith.constant 4 : i32
    %c0_i32_77 = arith.constant 0 : i32
    %142 = arith.cmpi eq, %arg1, %c0_i32_77 : i32
    %143 = arith.extui %142 : i1 to i32
    %c0_i32_78 = arith.constant 0 : i32
    %144 = arith.cmpi ne, %143, %c0_i32_78 : i32
    scf.if %144 {
      %c0_79 = arith.constant 0 : index
      %c0_80 = arith.constant 0 : index
      %145 = vector.load %arg11[%c0_79, %c0_80] : memref<8x128xf32, #tpu.memory_space<vmem>>, vector<8x128xf32>
      %c0_81 = arith.constant 0 : index
      %c0_82 = arith.constant 0 : index
      %146 = vector.load %arg9[%c0_81, %c0_82] : memref<8x128xf32, #tpu.memory_space<vmem>>, vector<8x128xf32>
      tpu.vector_store %arg9[%c0_81, %c0_82], %145 {strides = array<i32>} : memref<8x128xf32, #tpu.memory_space<vmem>>, vector<8x128xf32>,
      %c0_83 = arith.constant 0 : index
      %c0_84 = arith.constant 0 : index
      %147 = vector.load %arg12[%c0_83, %c0_84] : memref<8x128xf32, #tpu.memory_space<vmem>>, vector<8x128xf32>
      %c0_85 = arith.constant 0 : index
      %c0_86 = arith.constant 0 : index
      %148 = vector.load %arg10[%c0_85, %c0_86] : memref<8x128xf32, #tpu.memory_space<vmem>>, vector<8x128xf32>
      tpu.vector_store %arg10[%c0_85, %c0_86], %147 {strides = array<i32>} : memref<8x128xf32, #tpu.memory_space<vmem>>, vector<8x128xf32>,
    } else {
    }
    return
  }
  func.func @transform_0(%arg0: i32, %arg1: i32) -> (i32, i32, i32) {
    %c0_i32 = arith.constant 0 : i32
    %c0_i32_0 = arith.constant 0 : i32
    return %arg1, %arg0, %c0_i32 : i32, i32, i32
  }
  func.func @transform_1(%arg0: i32, %arg1: i32) -> (i32, i32) {
    %c0_i32 = arith.constant 0 : i32
    %c0_i32_0 = arith.constant 0 : i32
    return %arg0, %c0_i32 : i32, i32
  }
  func.func @transform_2(%arg0: i32, %arg1: i32) -> (i32, i32) {
    %c0_i32 = arith.constant 0 : i32
    %c0_i32_0 = arith.constant 0 : i32
    return %arg0, %c0_i32 : i32, i32
  }
  func.func @transform_3(%arg0: i32, %arg1: i32) -> (i32, i32) {
    %c0_i32 = arith.constant 0 : i32
    %c0_i32_0 = arith.constant 0 : i32
    %c0_i32_1 = arith.constant 0 : i32
    return %c0_i32, %c0_i32_0 : i32, i32
  }
  func.func @transform_4(%arg0: i32, %arg1: i32) -> (i32, i32) {
    %c0_i32 = arith.constant 0 : i32
    %c0_i32_0 = arith.constant 0 : i32
    %c0_i32_1 = arith.constant 0 : i32
    return %c0_i32, %c0_i32_0 : i32, i32
  }
  func.func @transform_5(%arg0: i32, %arg1: i32) -> (i32, i32) {
    %c0_i32 = arith.constant 0 : i32
    %c0_i32_0 = arith.constant 0 : i32
    %c0_i32_1 = arith.constant 0 : i32
    return %c0_i32, %c0_i32_0 : i32, i32
  }
  func.func @transform_6(%arg0: i32, %arg1: i32) -> (i32, i32, i32) {
    %c0_i32 = arith.constant 0 : i32
    %c0_i32_0 = arith.constant 0 : i32
    return %arg1, %arg0, %c0_i32 : i32, i32, i32
  }
  func.func @transform_7(%arg0: i32, %arg1: i32) -> (i32, i32) {
    %c0_i32 = arith.constant 0 : i32
    %c0_i32_0 = arith.constant 0 : i32
    return %arg0, %c0_i32 : i32, i32
  }
  func.func @transform_8(%arg0: i32, %arg1: i32) -> (i32, i32) {
    %c0_i32 = arith.constant 0 : i32
    %c0_i32_0 = arith.constant 0 : i32
    return %arg0, %c0_i32 : i32, i32
  }
}

</mosaic_0001>

<llo_original>
// kernel: tpu_custom_call.1
$region0: #{tpu_custom_call.1}
  #allocation0 [shape = 'u32[]', space=smem, size = 0x4, offset = 0x4, fixed_abs, tag = 'smem constant byte address 0x4 - core index']
  #allocation1 [shape = 'u32[144,128]{1,0:T(1,128)}', space=vmem, size = 0x12000, scoped, tag = 'internal scratch']
  #allocation2 [shape = 'f32[8,128]{1,0:T(8,128)}', space=vmem, size = 0x1000, scoped, tag = 'scratch operand']
  #allocation3 [shape = 'f32[8,128]{1,0:T(8,128)}', space=vmem, size = 0x1000, scoped, tag = 'scratch operand']
  #allocation4 [shape = 'f32[4,8,512]{2,1,0:T(8,128)}', space=vmem, size = 0x10000, scoped, tag = 'scratch operand']
  %s0 = inlined_call_operand.hbm [shape: f32[4,8,128], index: 0, kind: input, shape index: {}]
  %s1 = inlined_call_operand.hbm [shape: f32[8,128], index: 1, kind: input, shape index: {}]
  %s2 = inlined_call_operand.hbm [shape: f32[8,128], index: 2, kind: input, shape index: {}]
  %s3 = inlined_call_operand.hbm [shape: bf16[128,512], index: 3, kind: input, shape index: {}]
  %s4 = inlined_call_operand.hbm [shape: bf16[128,512], index: 4, kind: input, shape index: {}]
  %s5 = inlined_call_operand.vmem [shape: f32[1,512], index: 5, kind: input, shape index: {}]
  %s6 = inlined_call_operand.hbm [shape: f32[4,8,128], index: 6, kind: output, shape index: {0}]
  %s7 = inlined_call_operand.hbm [shape: f32[8,128], index: 7, kind: output, shape index: {1}]
  %s8 = inlined_call_operand.hbm [shape: f32[8,128], index: 8, kind: output, shape index: {2}]
  %9 = xla_tuple %s6, %s7, %s8
  %s10 = sld [smem:[#allocation0]]
  $region78: #{tpu_custom_call.1} parent=0
    _
  %s12 = ssub.s32 1, %s10
  %s13 = scalar_select 0, %s12, %s10
  $region1: #{tpu_custom_call.1} parent=0
    #allocation5 [shape = 'u8[16384]{0}', space=vmem, size = 0x4000, scoped, tag = 'input window, operand 0, single buffered']
    #allocation6 [shape = 's32[1]{0}', space=sflag, size = 0x4, scoped, tag = 'scoped memory for tpu_custom_call.1']
    #allocation7 [shape = 's32[1]{0}', space=sflag, size = 0x4, scoped, tag = 'scoped memory for tpu_custom_call.1']
    #allocation8 [shape = 'u8[4096]{0}', space=vmem, size = 0x1000, scoped, tag = 'input window, operand 1, single buffered']
    #allocation9 [shape = 's32[1]{0}', space=sflag, size = 0x4, scoped, tag = 'scoped memory for tpu_custom_call.1']
    #allocation10 [shape = 'u8[4096]{0}', space=vmem, size = 0x1000, scoped, tag = 'input window, operand 2, single buffered']
    #allocation11 [shape = 'u8[131072]{0}', space=vmem, size = 0x20000, scoped, tag = 'input window, operand 3, single buffered']
    #allocation12 [shape = 's32[1]{0}', space=sflag, size = 0x4, scoped, tag = 'scoped memory for tpu_custom_call.1']
    #allocation13 [shape = 'u8[131072]{0}', space=vmem, size = 0x20000, scoped, tag = 'input window, operand 4, single buffered']
    #allocation14 [shape = 'u8[16384]{0}', space=vmem, size = 0x4000, scoped, tag = 'output window, operand 0, single buffered']
    #allocation15 [shape = 'u8[4096]{0}', space=vmem, size = 0x1000, scoped, tag = 'output window, operand 1, single buffered']
    #allocation16 [shape = 's32[1]{0}', space=sflag, size = 0x4, scoped, tag = 'scoped memory for tpu_custom_call.1']
    #allocation17 [shape = 'u8[4096]{0}', space=vmem, size = 0x1000, scoped, tag = 'output window, operand 2, single buffered']
    %14 = vsyncpa [#allocation6], 0
    %15 = vsyncpa [#allocation9], 0
    %16 = vsyncpa [#allocation12], 0
    %17 = vsyncpa [#allocation7], 0
    %18 = vsyncpa [#allocation16], 0
    // Predicated region
    $region2: #{tpu_custom_call.1} parent=1 // pred_check
      _
    $region3: #{tpu_custom_call.1} parent=1 // pred_check_branch
      %20 = sbr.rel (0) target = $region5
    $region4: #{tpu_custom_call.1} parent=1 // pred_region
      %s22 = ssub.s32 512, 512
      %23 = vsyncadd [#allocation6], %s22
      %s24 = sshll.u32 [#allocation5], 4
      %s25 = int_to_ptr.vmem [resolvable:$true] %s24
      %30 = dma.hbm_to_vmem [thread:$0]  %s0, 512, %s25, [#allocation6], 128, 128, 8
    $region5: #{tpu_custom_call.1} parent=1 // pred_fallthru
      _
    // Predicated region
    $region6: #{tpu_custom_call.1} parent=1 // pred_check
      _
    $region7: #{tpu_custom_call.1} parent=1 // pred_check_branch
      %32 = sbr.rel (0) target = $region9
    $region8: #{tpu_custom_call.1} parent=1 // pred_region
      %s34 = ssub.s32 128, 128
      %35 = vsyncadd [#allocation9], %s34
      %s37 = sshll.u32 [#allocation8], 4
      %s38 = int_to_ptr.vmem [resolvable:$true] %s37
      %40 = dma.hbm_to_vmem [thread:$0]  %s1, 128, %s38, [#allocation9]
    $region9: #{tpu_custom_call.1} parent=1 // pred_fallthru
      _
    // Predicated region
    $region10: #{tpu_custom_call.1} parent=1 // pred_check
      _
    $region11: #{tpu_custom_call.1} parent=1 // pred_check_branch
      %42 = sbr.rel (0) target = $region13
    $region12: #{tpu_custom_call.1} parent=1 // pred_region
      %s44 = ssub.s32 128, 128
      %45 = vsyncadd [#allocation9], %s44
      %s47 = sshll.u32 [#allocation10], 4
      %s48 = int_to_ptr.vmem [resolvable:$true] %s47
      %50 = dma.hbm_to_vmem [thread:$0]  %s2, 128, %s48, [#allocation9]
    $region13: #{tpu_custom_call.1} parent=1 // pred_fallthru
      _
    // Predicated region
    $region14: #{tpu_custom_call.1} parent=1 // pred_check
      _
    $region15: #{tpu_custom_call.1} parent=1 // pred_check_branch
      %52 = sbr.rel (0) target = $region17
    $region16: #{tpu_custom_call.1} parent=1 // pred_region
      %s54 = ssub.s32 4096, 4096
      %55 = vsyncadd [#allocation12], %s54
      %s56 = sshll.u32 [#allocation11], 4
      %s57 = int_to_ptr.vmem [resolvable:$true] %s56
      %62 = dma.hbm_to_vmem [thread:$0]  %s3, 4096, %s57, [#allocation12], 256, 256, 16
    $region17: #{tpu_custom_call.1} parent=1 // pred_fallthru
      _
    // Predicated region
    $region18: #{tpu_custom_call.1} parent=1 // pred_check
      _
    $region19: #{tpu_custom_call.1} parent=1 // pred_check_branch
      %64 = sbr.rel (0) target = $region21
    $region20: #{tpu_custom_call.1} parent=1 // pred_region
      %s66 = ssub.s32 4096, 4096
      %67 = vsyncadd [#allocation12], %s66
      %s68 = sshll.u32 [#allocation13], 4
      %s69 = int_to_ptr.vmem [resolvable:$true] %s68
      %74 = dma.hbm_to_vmem [thread:$0]  %s4, 4096, %s69, [#allocation12], 256, 256, 16
    $region21: #{tpu_custom_call.1} parent=1 // pred_fallthru
      _
    // Predicated region
    $region22: #{tpu_custom_call.1} parent=1 // pred_check
      _
    $region23: #{tpu_custom_call.1} parent=1 // pred_check_branch
      %76 = sbr.rel (0) target = $region25
    $region24: #{tpu_custom_call.1} parent=1 // pred_region
      _
    $region25: #{tpu_custom_call.1} parent=1 // pred_fallthru
      _
    // Predicated region
    $region26: #{tpu_custom_call.1} parent=1 // pred_check
      _
    $region27: #{tpu_custom_call.1} parent=1 // pred_check_branch
      %78 = sbr.rel (0) target = $region29
    $region28: #{tpu_custom_call.1} parent=1 // pred_region
      %79 = dma.done [#allocation6], 512
    $region29: #{tpu_custom_call.1} parent=1 // pred_fallthru
      _
    // Predicated region
    $region30: #{tpu_custom_call.1} parent=1 // pred_check
      _
    $region31: #{tpu_custom_call.1} parent=1 // pred_check_branch
      %81 = sbr.rel (0) target = $region33
    $region32: #{tpu_custom_call.1} parent=1 // pred_region
      %82 = dma.done [#allocation9], 128
    $region33: #{tpu_custom_call.1} parent=1 // pred_fallthru
      _
    // Predicated region
    $region34: #{tpu_custom_call.1} parent=1 // pred_check
      _
    $region35: #{tpu_custom_call.1} parent=1 // pred_check_branch
      %84 = sbr.rel (0) target = $region37
    $region36: #{tpu_custom_call.1} parent=1 // pred_region
      %85 = dma.done [#allocation9], 128
    $region37: #{tpu_custom_call.1} parent=1 // pred_fallthru
      _
    // Predicated region
    $region38: #{tpu_custom_call.1} parent=1 // pred_check
      _
    $region39: #{tpu_custom_call.1} parent=1 // pred_check_branch
      %87 = sbr.rel (0) target = $region41
    $region40: #{tpu_custom_call.1} parent=1 // pred_region
      %88 = dma.done [#allocation12], 4096
    $region41: #{tpu_custom_call.1} parent=1 // pred_fallthru
      _
    // Predicated region
    $region42: #{tpu_custom_call.1} parent=1 // pred_check
      _
    $region43: #{tpu_custom_call.1} parent=1 // pred_check_branch
      %90 = sbr.rel (0) target = $region45
    $region44: #{tpu_custom_call.1} parent=1 // pred_region
      %91 = dma.done [#allocation12], 4096
    $region45: #{tpu_custom_call.1} parent=1 // pred_fallthru
      _
    %p93 = scmp.eq.s32.totalorder 0, 0
    // Predicated region
    $region46: #{tpu_custom_call.1} parent=1 // pred_check
      %p94 = pneg %p93
    $region47: #{tpu_custom_call.1} parent=1 // pred_check_branch
      %96 = sbr.rel (%p94) target = $region49
    $region48: #{tpu_custom_call.1} parent=1 // pred_region
      %v97 = vld [vmem:[#allocation8] sm:$0xff]
      %98 = vst [vmem:[#allocation2] sm:$0xff] %v97
      %v99 = vld [vmem:[#allocation10] sm:$0xff]
      %100 = vst [vmem:[#allocation3] sm:$0xff] %v99
    $region49: #{tpu_custom_call.1} parent=1 // pred_fallthru
      _
    %v101 = vld [vmem:[#allocation5] sm:$0xff]
    %v102 = vld [vmem:[#allocation5 + $0x8] sm:$0xff]
    %v103 = vld [vmem:[#allocation5 + $0x10] sm:$0xff]
    %v104 = vld [vmem:[#allocation5 + $0x18] sm:$0xff]
    %v105 = vpack.c.bf16 %v102, %v101
    %v106 = vpack.c.bf16 %v104, %v103
    %v107 = vld [vmem:[#allocation11] sm:$0xff]
    %v108 = vld [vmem:[#allocation11 + $0x8] sm:$0xff]
    %v109 = vld [vmem:[#allocation11 + $0x10] sm:$0xff]
    %v110 = vld [vmem:[#allocation11 + $0x18] sm:$0xff]
    %v111 = vld [vmem:[#allocation11 + $0x20] sm:$0xff]
    %v112 = vld [vmem:[#allocation11 + $0x28] sm:$0xff]
    %v113 = vld [vmem:[#allocation11 + $0x30] sm:$0xff]
    %v114 = vld [vmem:[#allocation11 + $0x38] sm:$0xff]
    %v115 = vld [vmem:[#allocation11 + $0x40] sm:$0xff]
    %v116 = vld [vmem:[#allocation11 + $0x48] sm:$0xff]
    %v117 = vld [vmem:[#allocation11 + $0x50] sm:$0xff]
    %v118 = vld [vmem:[#allocation11 + $0x58] sm:$0xff]
    %v119 = vld [vmem:[#allocation11 + $0x60] sm:$0xff]
    %v120 = vld [vmem:[#allocation11 + $0x68] sm:$0xff]
    %v121 = vld [vmem:[#allocation11 + $0x70] sm:$0xff]
    %v122 = vld [vmem:[#allocation11 + $0x78] sm:$0xff]
    %v123 = vld [vmem:[#allocation11 + $0x80] sm:$0xff]
    %v124 = vld [vmem:[#allocation11 + $0x88] sm:$0xff]
    %v125 = vld [vmem:[#allocation11 + $0x90] sm:$0xff]
    %v126 = vld [vmem:[#allocation11 + $0x98] sm:$0xff]
    %v127 = vld [vmem:[#allocation11 + $0xa0] sm:$0xff]
    %v128 = vld [vmem:[#allocation11 + $0xa8] sm:$0xff]
    %v129 = vld [vmem:[#allocation11 + $0xb0] sm:$0xff]
    %v130 = vld [vmem:[#allocation11 + $0xb8] sm:$0xff]
    %v131 = vld [vmem:[#allocation11 + $0xc0] sm:$0xff]
    %v132 = vld [vmem:[#allocation11 + $0xc8] sm:$0xff]
    %v133 = vld [vmem:[#allocation11 + $0xd0] sm:$0xff]
    %v134 = vld [vmem:[#allocation11 + $0xd8] sm:$0xff]
    %v135 = vld [vmem:[#allocation11 + $0xe0] sm:$0xff]
    %v136 = vld [vmem:[#allocation11 + $0xe8] sm:$0xff]
    %v137 = vld [vmem:[#allocation11 + $0xf0] sm:$0xff]
    %v138 = vld [vmem:[#allocation11 + $0xf8] sm:$0xff]
    %v139 = vld [vmem:[%s5] sm:$0xf]
    %v141 = vlaneseq
    %v142 = vshrl.u32 %v141, 7
    %v143 = vsub.s32 0, %v142
    %v144 = vrot.slane %v139, %v143
    %v145 = vlaneseq
    %v146 = vshrl.u32 %v145, 7
    %v147 = vsub.s32 1, %v146
    %v148 = vrot.slane %v139, %v147
    %v149 = vlaneseq
    %v150 = vshrl.u32 %v149, 7
    %v151 = vsub.s32 2, %v150
    %v152 = vrot.slane %v139, %v151
    %v153 = vlaneseq
    %v154 = vshrl.u32 %v153, 7
    %v155 = vsub.s32 3, %v154
    %v156 = vrot.slane %v139, %v155
    %v193 = vunpack.c.l.b16 %v107
    %v194 = vunpack.c.h.b16 %v107
    %v195 = vunpack.c.l.b16 %v108
    %v196 = vunpack.c.h.b16 %v108
    %v197 = vunpack.c.l.b16 %v109
    %v198 = vunpack.c.h.b16 %v109
    %v199 = vunpack.c.l.b16 %v110
    %v200 = vunpack.c.h.b16 %v110
    %v201 = vunpack.c.l.b16 %v111
    %v202 = vunpack.c.h.b16 %v111
    %v203 = vunpack.c.l.b16 %v112
    %v204 = vunpack.c.h.b16 %v112
    %v205 = vunpack.c.l.b16 %v113
    %v206 = vunpack.c.h.b16 %v113
    %v207 = vunpack.c.l.b16 %v114
    %v208 = vunpack.c.h.b16 %v114
    %v209 = vunpack.c.l.b16 %v115
    %v210 = vunpack.c.h.b16 %v115
    %v211 = vunpack.c.l.b16 %v116
    %v212 = vunpack.c.h.b16 %v116
    %v213 = vunpack.c.l.b16 %v117
    %v214 = vunpack.c.h.b16 %v117
    %v215 = vunpack.c.l.b16 %v118
    %v216 = vunpack.c.h.b16 %v118
    %v217 = vunpack.c.l.b16 %v119
    %v218 = vunpack.c.h.b16 %v119
    %v219 = vunpack.c.l.b16 %v120
    %v220 = vunpack.c.h.b16 %v120
    %v221 = vunpack.c.l.b16 %v121
    %v222 = vunpack.c.h.b16 %v121
    %v223 = vunpack.c.l.b16 %v122
    %v224 = vunpack.c.h.b16 %v122
    %v225 = vunpack.c.l.b16 %v123
    %v226 = vunpack.c.h.b16 %v123
    %v227 = vunpack.c.l.b16 %v124
    %v228 = vunpack.c.h.b16 %v124
    %v229 = vunpack.c.l.b16 %v125
    %v230 = vunpack.c.h.b16 %v125
    %v231 = vunpack.c.l.b16 %v126
    %v232 = vunpack.c.h.b16 %v126
    %v233 = vunpack.c.l.b16 %v127
    %v234 = vunpack.c.h.b16 %v127
    %v235 = vunpack.c.l.b16 %v128
    %v236 = vunpack.c.h.b16 %v128
    %v237 = vunpack.c.l.b16 %v129
    %v238 = vunpack.c.h.b16 %v129
    %v239 = vunpack.c.l.b16 %v130
    %v240 = vunpack.c.h.b16 %v130
    %v241 = vunpack.c.l.b16 %v131
    %v242 = vunpack.c.h.b16 %v131
    %v243 = vunpack.c.l.b16 %v132
    %v244 = vunpack.c.h.b16 %v132
    %v245 = vunpack.c.l.b16 %v133
    %v246 = vunpack.c.h.b16 %v133
    %v247 = vunpack.c.l.b16 %v134
    %v248 = vunpack.c.h.b16 %v134
    %v249 = vunpack.c.l.b16 %v135
    %v250 = vunpack.c.h.b16 %v135
    %v251 = vunpack.c.l.b16 %v136
    %v252 = vunpack.c.h.b16 %v136
    %v253 = vunpack.c.l.b16 %v137
    %v254 = vunpack.c.h.b16 %v137
    %v255 = vunpack.c.l.b16 %v138
    %v256 = vunpack.c.h.b16 %v138
    %v257 = vpack.c.b16 %v197, %v193
    %v258 = vpack.c.b16 %v198, %v194
    %v259 = vpack.c.b16 %v199, %v195
    %v260 = vpack.c.b16 %v200, %v196
    %v261 = vpack.c.b16 %v205, %v201
    %v262 = vpack.c.b16 %v206, %v202
    %v263 = vpack.c.b16 %v207, %v203
    %v264 = vpack.c.b16 %v208, %v204
    %v265 = vpack.c.b16 %v213, %v209
    %v266 = vpack.c.b16 %v214, %v210
    %v267 = vpack.c.b16 %v215, %v211
    %v268 = vpack.c.b16 %v216, %v212
    %v269 = vpack.c.b16 %v221, %v217
    %v270 = vpack.c.b16 %v222, %v218
    %v271 = vpack.c.b16 %v223, %v219
    %v272 = vpack.c.b16 %v224, %v220
    %v273 = vpack.c.b16 %v229, %v225
    %v274 = vpack.c.b16 %v230, %v226
    %v275 = vpack.c.b16 %v231, %v227
    %v276 = vpack.c.b16 %v232, %v228
    %v277 = vpack.c.b16 %v237, %v233
    %v278 = vpack.c.b16 %v238, %v234
    %v279 = vpack.c.b16 %v239, %v235
    %v280 = vpack.c.b16 %v240, %v236
    %v281 = vpack.c.b16 %v245, %v241
    %v282 = vpack.c.b16 %v246, %v242
    %v283 = vpack.c.b16 %v247, %v243
    %v284 = vpack.c.b16 %v248, %v244
    %v285 = vpack.c.b16 %v253, %v249
    %v286 = vpack.c.b16 %v254, %v250
    %v287 = vpack.c.b16 %v255, %v251
    %v288 = vpack.c.b16 %v256, %v252
    %321 = vmatprep.subr.bf16.mxu0 %v258
    %322 = vmatpush1.bf16.msra.mxu0 %v257
    %323 = vmatprep.subr.bf16.mxu0 %v262
    %324 = vmatpush1.bf16.msra.mxu0 %v261
    %325 = vmatprep.subr.bf16.mxu0 %v266
    %326 = vmatpush1.bf16.msra.mxu0 %v265
    %327 = vmatprep.subr.bf16.mxu0 %v270
    %328 = vmatpush1.bf16.msra.mxu0 %v269
    %329 = vmatprep.subr.bf16.mxu0 %v274
    %330 = vmatpush1.bf16.msra.mxu0 %v273
    %331 = vmatprep.subr.bf16.mxu0 %v278
    %332 = vmatpush1.bf16.msra.mxu0 %v277
    %333 = vmatprep.subr.bf16.mxu0 %v282
    %334 = vmatpush1.bf16.msra.mxu0 %v281
    %335 = vmatprep.subr.bf16.mxu0 %v286
    %336 = vmatpush1.bf16.msra.mxu0 %v285
    %337 = vmatprep.subr.bf16.mxu0 0
    %338 = vmatpush1.bf16.msra.mxu0 0
    %339 = vmatprep.subr.bf16.mxu0 0
    %340 = vmatpush1.bf16.msra.mxu0 0
    %341 = vmatprep.subr.bf16.mxu0 0
    %342 = vmatpush1.bf16.msra.mxu0 0
    %343 = vmatprep.subr.bf16.mxu0 0
    %344 = vmatpush1.bf16.msra.mxu0 0
    %345 = vmatprep.subr.bf16.mxu0 0
    %346 = vmatpush1.bf16.msra.mxu0 0
    %347 = vmatprep.subr.bf16.mxu0 0
    %348 = vmatpush1.bf16.msra.mxu0 0
    %349 = vmatprep.subr.bf16.mxu0 0
    %350 = vmatpush1.bf16.msra.mxu0 0
    %351 = vmatprep.subr.bf16.mxu0 0
    %352 = vmatpush1.bf16.msra.mxu0 0
    %353 = vmatprep.mubr.bf16.mxu0 0
    %354 = vmatmul.mubr.bf16.gmra.mrb[0].mxu0 %v105
    %v355 = vpop.f32.mrb[0].mxu0
    %v356 = vadd.f32 %v144, %v355
    %v357 = vpop.f32.mrb[0].mxu0
    %v358 = vadd.f32 %v148, %v357
    %v359 = vpop.f32.mrb[0].mxu0
    %v360 = vadd.f32 %v144, %v359
    %v361 = vpop.f32.mrb[0].mxu0
    %v362 = vadd.f32 %v148, %v361
    %363 = vmatprep.mubr.bf16.mxu0 0
    %364 = vmatmul.mubr.bf16.gmra.mrb[0].mxu0 %v106
    %v365 = vpop.f32.mrb[0].mxu0
    %v366 = vadd.f32 %v144, %v365
    %v367 = vpop.f32.mrb[0].mxu0
    %v368 = vadd.f32 %v148, %v367
    %v369 = vpop.f32.mrb[0].mxu0
    %v370 = vadd.f32 %v144, %v369
    %v371 = vpop.f32.mrb[0].mxu0
    %v372 = vadd.f32 %v148, %v371
    %373 = vdwg.mxu0
    %374 = vmatprep.subr.bf16.mxu0 %v260
    %375 = vmatpush1.bf16.msra.mxu0 %v259
    %376 = vmatprep.subr.bf16.mxu0 %v264
    %377 = vmatpush1.bf16.msra.mxu0 %v263
    %378 = vmatprep.subr.bf16.mxu0 %v268
    %379 = vmatpush1.bf16.msra.mxu0 %v267
    %380 = vmatprep.subr.bf16.mxu0 %v272
    %381 = vmatpush1.bf16.msra.mxu0 %v271
    %382 = vmatprep.subr.bf16.mxu0 %v276
    %383 = vmatpush1.bf16.msra.mxu0 %v275
    %384 = vmatprep.subr.bf16.mxu0 %v280
    %385 = vmatpush1.bf16.msra.mxu0 %v279
    %386 = vmatprep.subr.bf16.mxu0 %v284
    %387 = vmatpush1.bf16.msra.mxu0 %v283
    %388 = vmatprep.subr.bf16.mxu0 %v288
    %389 = vmatpush1.bf16.msra.mxu0 %v287
    %390 = vmatprep.subr.bf16.mxu0 0
    %391 = vmatpush1.bf16.msra.mxu0 0
    %392 = vmatprep.subr.bf16.mxu0 0
    %393 = vmatpush1.bf16.msra.mxu0 0
    %394 = vmatprep.subr.bf16.mxu0 0
    %395 = vmatpush1.bf16.msra.mxu0 0
    %396 = vmatprep.subr.bf16.mxu0 0
    %397 = vmatpush1.bf16.msra.mxu0 0
    %398 = vmatprep.subr.bf16.mxu0 0
    %399 = vmatpush1.bf16.msra.mxu0 0
    %400 = vmatprep.subr.bf16.mxu0 0
    %401 = vmatpush1.bf16.msra.mxu0 0
    %402 = vmatprep.subr.bf16.mxu0 0
    %403 = vmatpush1.bf16.msra.mxu0 0
    %404 = vmatprep.subr.bf16.mxu0 0
    %405 = vmatpush1.bf16.msra.mxu0 0
    %406 = vmatprep.mubr.bf16.mxu0 0
    %407 = vmatmul.mubr.bf16.gmra.mrb[0].mxu0 %v105
    %v408 = vpop.f32.mrb[0].mxu0
    %v409 = vadd.f32 %v152, %v408
    %v410 = vpop.f32.mrb[0].mxu0
    %v411 = vadd.f32 %v156, %v410
    %v412 = vpop.f32.mrb[0].mxu0
    %v413 = vadd.f32 %v152, %v412
    %v414 = vpop.f32.mrb[0].mxu0
    %v415 = vadd.f32 %v156, %v414
    %416 = vmatprep.mubr.bf16.mxu0 0
    %417 = vmatmul.mubr.bf16.gmra.mrb[0].mxu0 %v106
    %v418 = vpop.f32.mrb[0].mxu0
    %v419 = vadd.f32 %v152, %v418
    %v420 = vpop.f32.mrb[0].mxu0
    %v421 = vadd.f32 %v156, %v420
    %v422 = vpop.f32.mrb[0].mxu0
    %v423 = vadd.f32 %v152, %v422
    %v424 = vpop.f32.mrb[0].mxu0
    %v425 = vadd.f32 %v156, %v424
    %426 = vdwg.mxu0
    %427 = vst [vmem:[#allocation4] sm:$0xff] %v356
    %428 = vst [vmem:[#allocation4 + $0x8] sm:$0xff] %v358
    %429 = vst [vmem:[#allocation4 + $0x10] sm:$0xff] %v409
    %430 = vst [vmem:[#allocation4 + $0x18] sm:$0xff] %v411
    %431 = vst [vmem:[#allocation4 + $0x20] sm:$0xff] %v360
    %432 = vst [vmem:[#allocation4 + $0x28] sm:$0xff] %v362
    %433 = vst [vmem:[#allocation4 + $0x30] sm:$0xff] %v413
    %434 = vst [vmem:[#allocation4 + $0x38] sm:$0xff] %v415
    %435 = vst [vmem:[#allocation4 + $0x40] sm:$0xff] %v366
    %436 = vst [vmem:[#allocation4 + $0x48] sm:$0xff] %v368
    %437 = vst [vmem:[#allocation4 + $0x50] sm:$0xff] %v419
    %438 = vst [vmem:[#allocation4 + $0x58] sm:$0xff] %v421
    %439 = vst [vmem:[#allocation4 + $0x60] sm:$0xff] %v370
    %440 = vst [vmem:[#allocation4 + $0x68] sm:$0xff] %v372
    %441 = vst [vmem:[#allocation4 + $0x70] sm:$0xff] %v423
    %442 = vst [vmem:[#allocation4 + $0x78] sm:$0xff] %v425
    %v443 = vld [vmem:[#allocation13] sm:$0xff]
    %v444 = vld [vmem:[#allocation13 + $0x8] sm:$0xff]
    %v445 = vld [vmem:[#allocation13 + $0x10] sm:$0xff]
    %v446 = vld [vmem:[#allocation13 + $0x18] sm:$0xff]
    %v447 = vld [vmem:[#allocation13 + $0x20] sm:$0xff]
    %v448 = vld [vmem:[#allocation13 + $0x28] sm:$0xff]
    %v449 = vld [vmem:[#allocation13 + $0x30] sm:$0xff]
    %v450 = vld [vmem:[#allocation13 + $0x38] sm:$0xff]
    %v451 = vld [vmem:[#allocation13 + $0x40] sm:$0xff]
    %v452 = vld [vmem:[#allocation13 + $0x48] sm:$0xff]
    %v453 = vld [vmem:[#allocation13 + $0x50] sm:$0xff]
    %v454 = vld [vmem:[#allocation13 + $0x58] sm:$0xff]
    %v455 = vld [vmem:[#allocation13 + $0x60] sm:$0xff]
    %v456 = vld [vmem:[#allocation13 + $0x68] sm:$0xff]
    %v457 = vld [vmem:[#allocation13 + $0x70] sm:$0xff]
    %v458 = vld [vmem:[#allocation13 + $0x78] sm:$0xff]
    %v459 = vld [vmem:[#allocation13 + $0x80] sm:$0xff]
    %v460 = vld [vmem:[#allocation13 + $0x88] sm:$0xff]
    %v461 = vld [vmem:[#allocation13 + $0x90] sm:$0xff]
    %v462 = vld [vmem:[#allocation13 + $0x98] sm:$0xff]
    %v463 = vld [vmem:[#allocation13 + $0xa0] sm:$0xff]
    %v464 = vld [vmem:[#allocation13 + $0xa8] sm:$0xff]
    %v465 = vld [vmem:[#allocation13 + $0xb0] sm:$0xff]
    %v466 = vld [vmem:[#allocation13 + $0xb8] sm:$0xff]
    %v467 = vld [vmem:[#allocation13 + $0xc0] sm:$0xff]
    %v468 = vld [vmem:[#allocation13 + $0xc8] sm:$0xff]
    %v469 = vld [vmem:[#allocation13 + $0xd0] sm:$0xff]
    %v470 = vld [vmem:[#allocation13 + $0xd8] sm:$0xff]
    %v471 = vld [vmem:[#allocation13 + $0xe0] sm:$0xff]
    %v472 = vld [vmem:[#allocation13 + $0xe8] sm:$0xff]
    %v473 = vld [vmem:[#allocation13 + $0xf0] sm:$0xff]
    %v474 = vld [vmem:[#allocation13 + $0xf8] sm:$0xff]
    %v475 = vld [vmem:[#allocation2] sm:$0xff]
    %v476 = vld [vmem:[#allocation3] sm:$0xff]
    %v477 = vld [vmem:[#allocation4] sm:$0xff]
    %v478 = vld [vmem:[#allocation4 + $0x8] sm:$0xff]
    %v479 = vld [vmem:[#allocation4 + $0x10] sm:$0xff]
    %v480 = vld [vmem:[#allocation4 + $0x18] sm:$0xff]
    %v481 = vpack.c.bf16 %v475, %v475
    %v514 = vunpack.c.l.b16 %v443
    %v515 = vunpack.c.h.b16 %v443
    %v516 = vunpack.c.l.b16 %v444
    %v517 = vunpack.c.h.b16 %v444
    %v518 = vunpack.c.l.b16 %v445
    %v519 = vunpack.c.h.b16 %v445
    %v520 = vunpack.c.l.b16 %v446
    %v521 = vunpack.c.h.b16 %v446
    %v522 = vunpack.c.l.b16 %v447
    %v523 = vunpack.c.h.b16 %v447
    %v524 = vunpack.c.l.b16 %v448
    %v525 = vunpack.c.h.b16 %v448
    %v526 = vunpack.c.l.b16 %v449
    %v527 = vunpack.c.h.b16 %v449
    %v528 = vunpack.c.l.b16 %v450
    %v529 = vunpack.c.h.b16 %v450
    %v530 = vunpack.c.l.b16 %v451
    %v531 = vunpack.c.h.b16 %v451
    %v532 = vunpack.c.l.b16 %v452
    %v533 = vunpack.c.h.b16 %v452
    %v534 = vunpack.c.l.b16 %v453
    %v535 = vunpack.c.h.b16 %v453
    %v536 = vunpack.c.l.b16 %v454
    %v537 = vunpack.c.h.b16 %v454
    %v538 = vunpack.c.l.b16 %v455
    %v539 = vunpack.c.h.b16 %v455
    %v540 = vunpack.c.l.b16 %v456
    %v541 = vunpack.c.h.b16 %v456
    %v542 = vunpack.c.l.b16 %v457
    %v543 = vunpack.c.h.b16 %v457
    %v544 = vunpack.c.l.b16 %v458
    %v545 = vunpack.c.h.b16 %v458
    %v546 = vunpack.c.l.b16 %v459
    %v547 = vunpack.c.h.b16 %v459
    %v548 = vunpack.c.l.b16 %v460
    %v549 = vunpack.c.h.b16 %v460
    %v550 = vunpack.c.l.b16 %v461
    %v551 = vunpack.c.h.b16 %v461
    %v552 = vunpack.c.l.b16 %v462
    %v553 = vunpack.c.h.b16 %v462
    %v554 = vunpack.c.l.b16 %v463
    %v555 = vunpack.c.h.b16 %v463
    %v556 = vunpack.c.l.b16 %v464
    %v557 = vunpack.c.h.b16 %v464
    %v558 = vunpack.c.l.b16 %v465
    %v559 = vunpack.c.h.b16 %v465
    %v560 = vunpack.c.l.b16 %v466
    %v561 = vunpack.c.h.b16 %v466
    %v562 = vunpack.c.l.b16 %v467
    %v563 = vunpack.c.h.b16 %v467
    %v564 = vunpack.c.l.b16 %v468
    %v565 = vunpack.c.h.b16 %v468
    %v566 = vunpack.c.l.b16 %v469
    %v567 = vunpack.c.h.b16 %v469
    %v568 = vunpack.c.l.b16 %v470
    %v569 = vunpack.c.h.b16 %v470
    %v570 = vunpack.c.l.b16 %v471
    %v571 = vunpack.c.h.b16 %v471
    %v572 = vunpack.c.l.b16 %v472
    %v573 = vunpack.c.h.b16 %v472
    %v574 = vunpack.c.l.b16 %v473
    %v575 = vunpack.c.h.b16 %v473
    %v576 = vunpack.c.l.b16 %v474
    %v577 = vunpack.c.h.b16 %v474
    %v578 = vpack.c.b16 %v518, %v514
    %v579 = vpack.c.b16 %v519, %v515
    %v580 = vpack.c.b16 %v520, %v516
    %v581 = vpack.c.b16 %v521, %v517
    %v582 = vpack.c.b16 %v526, %v522
    %v583 = vpack.c.b16 %v527, %v523
    %v584 = vpack.c.b16 %v528, %v524
    %v585 = vpack.c.b16 %v529, %v525
    %v586 = vpack.c.b16 %v534, %v530
    %v587 = vpack.c.b16 %v535, %v531
    %v588 = vpack.c.b16 %v536, %v532
    %v589 = vpack.c.b16 %v537, %v533
    %v590 = vpack.c.b16 %v542, %v538
    %v591 = vpack.c.b16 %v543, %v539
    %v592 = vpack.c.b16 %v544, %v540
    %v593 = vpack.c.b16 %v545, %v541
    %v594 = vpack.c.b16 %v550, %v546
    %v595 = vpack.c.b16 %v551, %v547
    %v596 = vpack.c.b16 %v552, %v548
    %v597 = vpack.c.b16 %v553, %v549
    %v598 = vpack.c.b16 %v558, %v554
    %v599 = vpack.c.b16 %v559, %v555
    %v600 = vpack.c.b16 %v560, %v556
    %v601 = vpack.c.b16 %v561, %v557
    %v602 = vpack.c.b16 %v566, %v562
    %v603 = vpack.c.b16 %v567, %v563
    %v604 = vpack.c.b16 %v568, %v564
    %v605 = vpack.c.b16 %v569, %v565
    %v606 = vpack.c.b16 %v574, %v570
    %v607 = vpack.c.b16 %v575, %v571
    %v608 = vpack.c.b16 %v576, %v572
    %v609 = vpack.c.b16 %v577, %v573
    %642 = vmatprep.subr.bf16.mxu0 %v579
    %643 = vmatpush1.bf16.msra.mxu0 %v578
    %644 = vmatprep.subr.bf16.mxu0 %v583
    %645 = vmatpush1.bf16.msra.mxu0 %v582
    %646 = vmatprep.subr.bf16.mxu0 %v587
    %647 = vmatpush1.bf16.msra.mxu0 %v586
    %648 = vmatprep.subr.bf16.mxu0 %v591
    %649 = vmatpush1.bf16.msra.mxu0 %v590
    %650 = vmatprep.subr.bf16.mxu0 %v595
    %651 = vmatpush1.bf16.msra.mxu0 %v594
    %652 = vmatprep.subr.bf16.mxu0 %v599
    %653 = vmatpush1.bf16.msra.mxu0 %v598
    %654 = vmatprep.subr.bf16.mxu0 %v603
    %655 = vmatpush1.bf16.msra.mxu0 %v602
    %656 = vmatprep.subr.bf16.mxu0 %v607
    %657 = vmatpush1.bf16.msra.mxu0 %v606
    %658 = vmatprep.subr.bf16.mxu0 0
    %659 = vmatpush1.bf16.msra.mxu0 0
    %660 = vmatprep.subr.bf16.mxu0 0
    %661 = vmatpush1.bf16.msra.mxu0 0
    %662 = vmatprep.subr.bf16.mxu0 0
    %663 = vmatpush1.bf16.msra.mxu0 0
    %664 = vmatprep.subr.bf16.mxu0 0
    %665 = vmatpush1.bf16.msra.mxu0 0
    %666 = vmatprep.subr.bf16.mxu0 0
    %667 = vmatpush1.bf16.msra.mxu0 0
    %668 = vmatprep.subr.bf16.mxu0 0
    %669 = vmatpush1.bf16.msra.mxu0 0
    %670 = vmatprep.subr.bf16.mxu0 0
    %671 = vmatpush1.bf16.msra.mxu0 0
    %672 = vmatprep.subr.bf16.mxu0 0
    %673 = vmatpush1.bf16.msra.mxu0 0
    %674 = vmatprep.mubr.bf16.mxu0 0
    %675 = vmatmul.mubr.bf16.gmra.mrb[0].mxu0 %v481
    %v676 = vpop.f32.mrb[0].mxu0
    %v677 = vadd.f32 0.0, %v676
    %v678 = vpop.f32.mrb[0].mxu0
    %v679 = vadd.f32 0.0, %v678
    %v680 = vpop.f32.mrb[0].mxu0
    %v681 = vpop.f32.mrb[0].mxu0
    %682 = vdwg.mxu0
    %683 = vmatprep.subr.bf16.mxu0 %v581
    %684 = vmatpush1.bf16.msra.mxu0 %v580
    %685 = vmatprep.subr.bf16.mxu0 %v585
    %686 = vmatpush1.bf16.msra.mxu0 %v584
    %687 = vmatprep.subr.bf16.mxu0 %v589
    %688 = vmatpush1.bf16.msra.mxu0 %v588
    %689 = vmatprep.subr.bf16.mxu0 %v593
    %690 = vmatpush1.bf16.msra.mxu0 %v592
    %691 = vmatprep.subr.bf16.mxu0 %v597
    %692 = vmatpush1.bf16.msra.mxu0 %v596
    %693 = vmatprep.subr.bf16.mxu0 %v601
    %694 = vmatpush1.bf16.msra.mxu0 %v600
    %695 = vmatprep.subr.bf16.mxu0 %v605
    %696 = vmatpush1.bf16.msra.mxu0 %v604
    %697 = vmatprep.subr.bf16.mxu0 %v609
    %698 = vmatpush1.bf16.msra.mxu0 %v608
    %699 = vmatprep.subr.bf16.mxu0 0
    %700 = vmatpush1.bf16.msra.mxu0 0
    %701 = vmatprep.subr.bf16.mxu0 0
    %702 = vmatpush1.bf16.msra.mxu0 0
    %703 = vmatprep.subr.bf16.mxu0 0
    %704 = vmatpush1.bf16.msra.mxu0 0
    %705 = vmatprep.subr.bf16.mxu0 0
    %706 = vmatpush1.bf16.msra.mxu0 0
    %707 = vmatprep.subr.bf16.mxu0 0
    %708 = vmatpush1.bf16.msra.mxu0 0
    %709 = vmatprep.subr.bf16.mxu0 0
    %710 = vmatpush1.bf16.msra.mxu0 0
    %711 = vmatprep.subr.bf16.mxu0 0
    %712 = vmatpush1.bf16.msra.mxu0 0
    %713 = vmatprep.subr.bf16.mxu0 0
    %714 = vmatpush1.bf16.msra.mxu0 0
    %715 = vmatprep.mubr.bf16.mxu0 0
    %716 = vmatmul.mubr.bf16.gmra.mrb[0].mxu0 %v481
    %v717 = vpop.f32.mrb[0].mxu0
    %v718 = vadd.f32 0.0, %v717
    %v719 = vpop.f32.mrb[0].mxu0
    %v720 = vadd.f32 0.0, %v719
    %v721 = vpop.f32.mrb[0].mxu0
    %v722 = vpop.f32.mrb[0].mxu0
    %723 = vdwg.mxu0
    %v724 = vadd.f32 %v477, %v677
    %v725 = vadd.f32 %v478, %v679
    %v726 = vadd.f32 %v479, %v718
    %v727 = vadd.f32 %v480, %v720
    %v728 = vmul.f32 %v724, 0.5
    %v729 = vmul.f32 %v725, 0.5
    %v730 = vmul.f32 %v726, 0.5
    %v731 = vtanh.pop %v728
    %v732 = vtanh.pop %v729
    %v733 = vtanh.pop %v730
    %v734 = vadd.f32 %v731, 1.0
    %v735 = vadd.f32 %v732, 1.0
    %v736 = vadd.f32 %v733, 1.0
    %v737 = vmul.f32 %v734, 0.5
    %v738 = vmul.f32 %v735, 0.5
    %v739 = vmul.f32 %v736, 0.5
    %v740 = vtanh.pop %v727
    %v741 = vmul.f32 %v738, %v476
    %v742 = vmul.f32 %v737, %v740
    %v743 = vadd.f32 %v741, %v742
    %v744 = vtanh.pop %v743
    %v745 = vmul.f32 %v739, %v744
    %746 = vst [vmem:[#allocation2] sm:$0xff] %v745
    %747 = vst [vmem:[#allocation3] sm:$0xff] %v743
    %748 = vst [vmem:[#allocation14] sm:$0xff] %v745
    %v749 = vld [vmem:[#allocation2] sm:$0xff]
    %v750 = vld [vmem:[#allocation3] sm:$0xff]
    %s751 = scalar_lea.vmem [#allocation4], 32
    %v752 = vld [vmem:[%s751] sm:$0xff]
    %v753 = vld [vmem:[%s751 + $0x8] sm:$0xff]
    %v754 = vld [vmem:[%s751 + $0x10] sm:$0xff]
    %v755 = vld [vmem:[%s751 + $0x18] sm:$0xff]
    %v756 = vpack.c.bf16 %v749, %v749
    %757 = vmatprep.subr.bf16.mxu0 %v579
    %758 = vmatpush1.bf16.msra.mxu0 %v578
    %759 = vmatprep.subr.bf16.mxu0 %v583
    %760 = vmatpush1.bf16.msra.mxu0 %v582
    %761 = vmatprep.subr.bf16.mxu0 %v587
    %762 = vmatpush1.bf16.msra.mxu0 %v586
    %763 = vmatprep.subr.bf16.mxu0 %v591
    %764 = vmatpush1.bf16.msra.mxu0 %v590
    %765 = vmatprep.subr.bf16.mxu0 %v595
    %766 = vmatpush1.bf16.msra.mxu0 %v594
    %767 = vmatprep.subr.bf16.mxu0 %v599
    %768 = vmatpush1.bf16.msra.mxu0 %v598
    %769 = vmatprep.subr.bf16.mxu0 %v603
    %770 = vmatpush1.bf16.msra.mxu0 %v602
    %771 = vmatprep.subr.bf16.mxu0 %v607
    %772 = vmatpush1.bf16.msra.mxu0 %v606
    %773 = vmatprep.subr.bf16.mxu0 0
    %774 = vmatpush1.bf16.msra.mxu0 0
    %775 = vmatprep.subr.bf16.mxu0 0
    %776 = vmatpush1.bf16.msra.mxu0 0
    %777 = vmatprep.subr.bf16.mxu0 0
    %778 = vmatpush1.bf16.msra.mxu0 0
    %779 = vmatprep.subr.bf16.mxu0 0
    %780 = vmatpush1.bf16.msra.mxu0 0
    %781 = vmatprep.subr.bf16.mxu0 0
    %782 = vmatpush1.bf16.msra.mxu0 0
    %783 = vmatprep.subr.bf16.mxu0 0
    %784 = vmatpush1.bf16.msra.mxu0 0
    %785 = vmatprep.subr.bf16.mxu0 0
    %786 = vmatpush1.bf16.msra.mxu0 0
    %787 = vmatprep.subr.bf16.mxu0 0
    %788 = vmatpush1.bf16.msra.mxu0 0
    %789 = vmatprep.mubr.bf16.mxu0 0
    %790 = vmatmul.mubr.bf16.gmra.mrb[0].mxu0 %v756
    %v791 = vpop.f32.mrb[0].mxu0
    %v792 = vadd.f32 0.0, %v791
    %v793 = vpop.f32.mrb[0].mxu0
    %v794 = vadd.f32 0.0, %v793
    %v795 = vpop.f32.mrb[0].mxu0
    %v796 = vpop.f32.mrb[0].mxu0
    %797 = vdwg.mxu0
    %798 = vmatprep.subr.bf16.mxu0 %v581
    %799 = vmatpush1.bf16.msra.mxu0 %v580
    %800 = vmatprep.subr.bf16.mxu0 %v585
    %801 = vmatpush1.bf16.msra.mxu0 %v584
    %802 = vmatprep.subr.bf16.mxu0 %v589
    %803 = vmatpush1.bf16.msra.mxu0 %v588
    %804 = vmatprep.subr.bf16.mxu0 %v593
    %805 = vmatpush1.bf16.msra.mxu0 %v592
    %806 = vmatprep.subr.bf16.mxu0 %v597
    %807 = vmatpush1.bf16.msra.mxu0 %v596
    %808 = vmatprep.subr.bf16.mxu0 %v601
    %809 = vmatpush1.bf16.msra.mxu0 %v600
    %810 = vmatprep.subr.bf16.mxu0 %v605
    %811 = vmatpush1.bf16.msra.mxu0 %v604
    %812 = vmatprep.subr.bf16.mxu0 %v609
    %813 = vmatpush1.bf16.msra.mxu0 %v608
    %814 = vmatprep.subr.bf16.mxu0 0
    %815 = vmatpush1.bf16.msra.mxu0 0
    %816 = vmatprep.subr.bf16.mxu0 0
    %817 = vmatpush1.bf16.msra.mxu0 0
    %818 = vmatprep.subr.bf16.mxu0 0
    %819 = vmatpush1.bf16.msra.mxu0 0
    %820 = vmatprep.subr.bf16.mxu0 0
    %821 = vmatpush1.bf16.msra.mxu0 0
    %822 = vmatprep.subr.bf16.mxu0 0
    %823 = vmatpush1.bf16.msra.mxu0 0
    %824 = vmatprep.subr.bf16.mxu0 0
    %825 = vmatpush1.bf16.msra.mxu0 0
    %826 = vmatprep.subr.bf16.mxu0 0
    %827 = vmatpush1.bf16.msra.mxu0 0
    %828 = vmatprep.subr.bf16.mxu0 0
    %829 = vmatpush1.bf16.msra.mxu0 0
    %830 = vmatprep.mubr.bf16.mxu0 0
    %831 = vmatmul.mubr.bf16.gmra.mrb[0].mxu0 %v756
    %v832 = vpop.f32.mrb[0].mxu0
    %v833 = vadd.f32 0.0, %v832
    %v834 = vpop.f32.mrb[0].mxu0
    %v835 = vadd.f32 0.0, %v834
    %v836 = vpop.f32.mrb[0].mxu0
    %v837 = vpop.f32.mrb[0].mxu0
    %838 = vdwg.mxu0
    %v839 = vadd.f32 %v752, %v792
    %v840 = vadd.f32 %v753, %v794
    %v841 = vadd.f32 %v754, %v833
    %v842 = vadd.f32 %v755, %v835
    %v843 = vmul.f32 %v839, 0.5
    %v844 = vmul.f32 %v840, 0.5
    %v845 = vmul.f32 %v841, 0.5
    %v846 = vtanh.pop %v843
    %v847 = vtanh.pop %v844
    %v848 = vtanh.pop %v845
    %v849 = vadd.f32 %v846, 1.0
    %v850 = vadd.f32 %v847, 1.0
    %v851 = vadd.f32 %v848, 1.0
    %v852 = vmul.f32 %v849, 0.5
    %v853 = vmul.f32 %v850, 0.5
    %v854 = vmul.f32 %v851, 0.5
    %v855 = vtanh.pop %v842
    %v856 = vmul.f32 %v853, %v750
    %v857 = vmul.f32 %v852, %v855
    %v858 = vadd.f32 %v856, %v857
    %v859 = vtanh.pop %v858
    %v860 = vmul.f32 %v854, %v859
    %861 = vst [vmem:[#allocation2] sm:$0xff] %v860
    %862 = vst [vmem:[#allocation3] sm:$0xff] %v858
    %s863 = scalar_lea.vmem [#allocation14], 8
    %864 = vst [vmem:[%s863] sm:$0xff] %v860
    %v865 = vld [vmem:[#allocation2] sm:$0xff]
    %v866 = vld [vmem:[#allocation3] sm:$0xff]
    %s867 = scalar_lea.vmem [#allocation4], 64
    %v868 = vld [vmem:[%s867] sm:$0xff]
    %v869 = vld [vmem:[%s867 + $0x8] sm:$0xff]
    %v870 = vld [vmem:[%s867 + $0x10] sm:$0xff]
    %v871 = vld [vmem:[%s867 + $0x18] sm:$0xff]
    %v872 = vpack.c.bf16 %v865, %v865
    %873 = vmatprep.subr.bf16.mxu0 %v579
    %874 = vmatpush1.bf16.msra.mxu0 %v578
    %875 = vmatprep.subr.bf16.mxu0 %v583
    %876 = vmatpush1.bf16.msra.mxu0 %v582
    %877 = vmatprep.subr.bf16.mxu0 %v587
    %878 = vmatpush1.bf16.msra.mxu0 %v586
    %879 = vmatprep.subr.bf16.mxu0 %v591
    %880 = vmatpush1.bf16.msra.mxu0 %v590
    %881 = vmatprep.subr.bf16.mxu0 %v595
    %882 = vmatpush1.bf16.msra.mxu0 %v594
    %883 = vmatprep.subr.bf16.mxu0 %v599
    %884 = vmatpush1.bf16.msra.mxu0 %v598
    %885 = vmatprep.subr.bf16.mxu0 %v603
    %886 = vmatpush1.bf16.msra.mxu0 %v602
    %887 = vmatprep.subr.bf16.mxu0 %v607
    %888 = vmatpush1.bf16.msra.mxu0 %v606
    %889 = vmatprep.subr.bf16.mxu0 0
    %890 = vmatpush1.bf16.msra.mxu0 0
    %891 = vmatprep.subr.bf16.mxu0 0
    %892 = vmatpush1.bf16.msra.mxu0 0
    %893 = vmatprep.subr.bf16.mxu0 0
    %894 = vmatpush1.bf16.msra.mxu0 0
    %895 = vmatprep.subr.bf16.mxu0 0
    %896 = vmatpush1.bf16.msra.mxu0 0
    %897 = vmatprep.subr.bf16.mxu0 0
    %898 = vmatpush1.bf16.msra.mxu0 0
    %899 = vmatprep.subr.bf16.mxu0 0
    %900 = vmatpush1.bf16.msra.mxu0 0
    %901 = vmatprep.subr.bf16.mxu0 0
    %902 = vmatpush1.bf16.msra.mxu0 0
    %903 = vmatprep.subr.bf16.mxu0 0
    %904 = vmatpush1.bf16.msra.mxu0 0
    %905 = vmatprep.mubr.bf16.mxu0 0
    %906 = vmatmul.mubr.bf16.gmra.mrb[0].mxu0 %v872
    %v907 = vpop.f32.mrb[0].mxu0
    %v908 = vadd.f32 0.0, %v907
    %v909 = vpop.f32.mrb[0].mxu0
    %v910 = vadd.f32 0.0, %v909
    %v911 = vpop.f32.mrb[0].mxu0
    %v912 = vpop.f32.mrb[0].mxu0
    %913 = vdwg.mxu0
    %914 = vmatprep.subr.bf16.mxu0 %v581
    %915 = vmatpush1.bf16.msra.mxu0 %v580
    %916 = vmatprep.subr.bf16.mxu0 %v585
    %917 = vmatpush1.bf16.msra.mxu0 %v584
    %918 = vmatprep.subr.bf16.mxu0 %v589
    %919 = vmatpush1.bf16.msra.mxu0 %v588
    %920 = vmatprep.subr.bf16.mxu0 %v593
    %921 = vmatpush1.bf16.msra.mxu0 %v592
    %922 = vmatprep.subr.bf16.mxu0 %v597
    %923 = vmatpush1.bf16.msra.mxu0 %v596
    %924 = vmatprep.subr.bf16.mxu0 %v601
    %925 = vmatpush1.bf16.msra.mxu0 %v600
    %926 = vmatprep.subr.bf16.mxu0 %v605
    %927 = vmatpush1.bf16.msra.mxu0 %v604
    %928 = vmatprep.subr.bf16.mxu0 %v609
    %929 = vmatpush1.bf16.msra.mxu0 %v608
    %930 = vmatprep.subr.bf16.mxu0 0
    %931 = vmatpush1.bf16.msra.mxu0 0
    %932 = vmatprep.subr.bf16.mxu0 0
    %933 = vmatpush1.bf16.msra.mxu0 0
    %934 = vmatprep.subr.bf16.mxu0 0
    %935 = vmatpush1.bf16.msra.mxu0 0
    %936 = vmatprep.subr.bf16.mxu0 0
    %937 = vmatpush1.bf16.msra.mxu0 0
    %938 = vmatprep.subr.bf16.mxu0 0
    %939 = vmatpush1.bf16.msra.mxu0 0
    %940 = vmatprep.subr.bf16.mxu0 0
    %941 = vmatpush1.bf16.msra.mxu0 0
    %942 = vmatprep.subr.bf16.mxu0 0
    %943 = vmatpush1.bf16.msra.mxu0 0
    %944 = vmatprep.subr.bf16.mxu0 0
    %945 = vmatpush1.bf16.msra.mxu0 0
    %946 = vmatprep.mubr.bf16.mxu0 0
    %947 = vmatmul.mubr.bf16.gmra.mrb[0].mxu0 %v872
    %v948 = vpop.f32.mrb[0].mxu0
    %v949 = vadd.f32 0.0, %v948
    %v950 = vpop.f32.mrb[0].mxu0
    %v951 = vadd.f32 0.0, %v950
    %v952 = vpop.f32.mrb[0].mxu0
    %v953 = vpop.f32.mrb[0].mxu0
    %954 = vdwg.mxu0
    %v955 = vadd.f32 %v868, %v908
    %v956 = vadd.f32 %v869, %v910
    %v957 = vadd.f32 %v870, %v949
    %v958 = vadd.f32 %v871, %v951
    %v959 = vmul.f32 %v955, 0.5
    %v960 = vmul.f32 %v956, 0.5
    %v961 = vmul.f32 %v957, 0.5
    %v962 = vtanh.pop %v959
    %v963 = vtanh.pop %v960
    %v964 = vtanh.pop %v961
    %v965 = vadd.f32 %v962, 1.0
    %v966 = vadd.f32 %v963, 1.0
    %v967 = vadd.f32 %v964, 1.0
    %v968 = vmul.f32 %v965, 0.5
    %v969 = vmul.f32 %v966, 0.5
    %v970 = vmul.f32 %v967, 0.5
    %v971 = vtanh.pop %v958
    %v972 = vmul.f32 %v969, %v866
    %v973 = vmul.f32 %v968, %v971
    %v974 = vadd.f32 %v972, %v973
    %v975 = vtanh.pop %v974
    %v976 = vmul.f32 %v970, %v975
    %977 = vst [vmem:[#allocation2] sm:$0xff] %v976
    %978 = vst [vmem:[#allocation3] sm:$0xff] %v974
    %s979 = scalar_lea.vmem [#allocation14], 16
    %980 = vst [vmem:[%s979] sm:$0xff] %v976
    %v981 = vld [vmem:[#allocation2] sm:$0xff]
    %v982 = vld [vmem:[#allocation3] sm:$0xff]
    %s983 = scalar_lea.vmem [#allocation4], 96
    %v984 = vld [vmem:[%s983] sm:$0xff]
    %v985 = vld [vmem:[%s983 + $0x8] sm:$0xff]
    %v986 = vld [vmem:[%s983 + $0x10] sm:$0xff]
    %v987 = vld [vmem:[%s983 + $0x18] sm:$0xff]
    %v988 = vpack.c.bf16 %v981, %v981
    %989 = vmatprep.subr.bf16.mxu0 %v579
    %990 = vmatpush1.bf16.msra.mxu0 %v578
    %991 = vmatprep.subr.bf16.mxu0 %v583
    %992 = vmatpush1.bf16.msra.mxu0 %v582
    %993 = vmatprep.subr.bf16.mxu0 %v587
    %994 = vmatpush1.bf16.msra.mxu0 %v586
    %995 = vmatprep.subr.bf16.mxu0 %v591
    %996 = vmatpush1.bf16.msra.mxu0 %v590
    %997 = vmatprep.subr.bf16.mxu0 %v595
    %998 = vmatpush1.bf16.msra.mxu0 %v594
    %999 = vmatprep.subr.bf16.mxu0 %v599
    %1000 = vmatpush1.bf16.msra.mxu0 %v598
    %1001 = vmatprep.subr.bf16.mxu0 %v603
    %1002 = vmatpush1.bf16.msra.mxu0 %v602
    %1003 = vmatprep.subr.bf16.mxu0 %v607
    %1004 = vmatpush1.bf16.msra.mxu0 %v606
    %1005 = vmatprep.subr.bf16.mxu0 0
    %1006 = vmatpush1.bf16.msra.mxu0 0
    %1007 = vmatprep.subr.bf16.mxu0 0
    %1008 = vmatpush1.bf16.msra.mxu0 0
    %1009 = vmatprep.subr.bf16.mxu0 0
    %1010 = vmatpush1.bf16.msra.mxu0 0
    %1011 = vmatprep.subr.bf16.mxu0 0
    %1012 = vmatpush1.bf16.msra.mxu0 0
    %1013 = vmatprep.subr.bf16.mxu0 0
    %1014 = vmatpush1.bf16.msra.mxu0 0
    %1015 = vmatprep.subr.bf16.mxu0 0
    %1016 = vmatpush1.bf16.msra.mxu0 0
    %1017 = vmatprep.subr.bf16.mxu0 0
    %1018 = vmatpush1.bf16.msra.mxu0 0
    %1019 = vmatprep.subr.bf16.mxu0 0
    %1020 = vmatpush1.bf16.msra.mxu0 0
    %1021 = vmatprep.mubr.bf16.mxu0 0
    %1022 = vmatmul.mubr.bf16.gmra.mrb[0].mxu0 %v988
    %v1023 = vpop.f32.mrb[0].mxu0
    %v1024 = vadd.f32 0.0, %v1023
    %v1025 = vpop.f32.mrb[0].mxu0
    %v1026 = vadd.f32 0.0, %v1025
    %v1027 = vpop.f32.mrb[0].mxu0
    %v1028 = vpop.f32.mrb[0].mxu0
    %1029 = vdwg.mxu0
    %1030 = vmatprep.subr.bf16.mxu0 %v581
    %1031 = vmatpush1.bf16.msra.mxu0 %v580
    %1032 = vmatprep.subr.bf16.mxu0 %v585
    %1033 = vmatpush1.bf16.msra.mxu0 %v584
    %1034 = vmatprep.subr.bf16.mxu0 %v589
    %1035 = vmatpush1.bf16.msra.mxu0 %v588
    %1036 = vmatprep.subr.bf16.mxu0 %v593
    %1037 = vmatpush1.bf16.msra.mxu0 %v592
    %1038 = vmatprep.subr.bf16.mxu0 %v597
    %1039 = vmatpush1.bf16.msra.mxu0 %v596
    %1040 = vmatprep.subr.bf16.mxu0 %v601
    %1041 = vmatpush1.bf16.msra.mxu0 %v600
    %1042 = vmatprep.subr.bf16.mxu0 %v605
    %1043 = vmatpush1.bf16.msra.mxu0 %v604
    %1044 = vmatprep.subr.bf16.mxu0 %v609
    %1045 = vmatpush1.bf16.msra.mxu0 %v608
    %1046 = vmatprep.subr.bf16.mxu0 0
    %1047 = vmatpush1.bf16.msra.mxu0 0
    %1048 = vmatprep.subr.bf16.mxu0 0
    %1049 = vmatpush1.bf16.msra.mxu0 0
    %1050 = vmatprep.subr.bf16.mxu0 0
    %1051 = vmatpush1.bf16.msra.mxu0 0
    %1052 = vmatprep.subr.bf16.mxu0 0
    %1053 = vmatpush1.bf16.msra.mxu0 0
    %1054 = vmatprep.subr.bf16.mxu0 0
    %1055 = vmatpush1.bf16.msra.mxu0 0
    %1056 = vmatprep.subr.bf16.mxu0 0
    %1057 = vmatpush1.bf16.msra.mxu0 0
    %1058 = vmatprep.subr.bf16.mxu0 0
    %1059 = vmatpush1.bf16.msra.mxu0 0
    %1060 = vmatprep.subr.bf16.mxu0 0
    %1061 = vmatpush1.bf16.msra.mxu0 0
    %1062 = vmatprep.mubr.bf16.mxu0 0
    %1063 = vmatmul.mubr.bf16.gmra.mrb[0].mxu0 %v988
    %v1064 = vpop.f32.mrb[0].mxu0
    %v1065 = vadd.f32 0.0, %v1064
    %v1066 = vpop.f32.mrb[0].mxu0
    %v1067 = vadd.f32 0.0, %v1066
    %v1068 = vpop.f32.mrb[0].mxu0
    %v1069 = vpop.f32.mrb[0].mxu0
    %1070 = vdwg.mxu0
    %v1071 = vadd.f32 %v984, %v1024
    %v1072 = vadd.f32 %v985, %v1026
    %v1073 = vadd.f32 %v986, %v1065
    %v1074 = vadd.f32 %v987, %v1067
    %v1075 = vmul.f32 %v1071, 0.5
    %v1076 = vmul.f32 %v1072, 0.5
    %v1077 = vmul.f32 %v1073, 0.5
    %v1078 = vtanh.pop %v1075
    %v1079 = vtanh.pop %v1076
    %v1080 = vtanh.pop %v1077
    %v1081 = vadd.f32 %v1078, 1.0
    %v1082 = vadd.f32 %v1079, 1.0
    %v1083 = vadd.f32 %v1080, 1.0
    %v1084 = vmul.f32 %v1081, 0.5
    %v1085 = vmul.f32 %v1082, 0.5
    %v1086 = vmul.f32 %v1083, 0.5
    %v1087 = vtanh.pop %v1074
    %v1088 = vmul.f32 %v1085, %v982
    %v1089 = vmul.f32 %v1084, %v1087
    %v1090 = vadd.f32 %v1088, %v1089
    %v1091 = vtanh.pop %v1090
    %v1092 = vmul.f32 %v1086, %v1091
    %1093 = vst [vmem:[#allocation2] sm:$0xff] %v1092
    %1094 = vst [vmem:[#allocation3] sm:$0xff] %v1090
    %s1095 = scalar_lea.vmem [#allocation14], 24
    %1096 = vst [vmem:[%s1095] sm:$0xff] %v1092
    // Predicated region
    $region50: #{tpu_custom_call.1} parent=1 // pred_check
      %p1097 = pneg %p93
    $region51: #{tpu_custom_call.1} parent=1 // pred_check_branch
      %1099 = sbr.rel (%p1097) target = $region53
    $region52: #{tpu_custom_call.1} parent=1 // pred_region
      %v1100 = vld [vmem:[#allocation2] sm:$0xff]
      %1101 = vst [vmem:[#allocation15] sm:$0xff] %v1100
      %v1102 = vld [vmem:[#allocation3] sm:$0xff]
      %1103 = vst [vmem:[#allocation17] sm:$0xff] %v1102
    $region53: #{tpu_custom_call.1} parent=1 // pred_fallthru
      _
    // Predicated region
    $region54: #{tpu_custom_call.1} parent=1 // pred_check
      _
    $region55: #{tpu_custom_call.1} parent=1 // pred_check_branch
      %1105 = sbr.rel (0) target = $region57
    $region56: #{tpu_custom_call.1} parent=1 // pred_region
      %s1107 = ssub.s32 512, 512
      %1108 = vsyncadd [#allocation7], %s1107
      %s1109 = sshll.u32 [#allocation14], 4
      %s1110 = int_to_ptr.vmem [resolvable:$true] %s1109
      %1115 = dma.vmem_to_hbm [thread:$0]  %s1110, 512, %s6, [#allocation7], 128, 128, 8
    $region57: #{tpu_custom_call.1} parent=1 // pred_fallthru
      _
    // Predicated region
    $region58: #{tpu_custom_call.1} parent=1 // pred_check
      _
    $region59: #{tpu_custom_call.1} parent=1 // pred_check_branch
      %1117 = sbr.rel (0) target = $region61
    $region60: #{tpu_custom_call.1} parent=1 // pred_region
      %s1119 = ssub.s32 128, 128
      %1120 = vsyncadd [#allocation16], %s1119
      %s1122 = sshll.u32 [#allocation15], 4
      %s1123 = int_to_ptr.vmem [resolvable:$true] %s1122
      %1125 = dma.vmem_to_hbm [thread:$0]  %s1123, 128, %s7, [#allocation16]
    $region61: #{tpu_custom_call.1} parent=1 // pred_fallthru
      _
    // Predicated region
    $region62: #{tpu_custom_call.1} parent=1 // pred_check
      _
    $region63: #{tpu_custom_call.1} parent=1 // pred_check_branch
      %1127 = sbr.rel (0) target = $region65
    $region64: #{tpu_custom_call.1} parent=1 // pred_region
      %s1129 = ssub.s32 128, 128
      %1130 = vsyncadd [#allocation16], %s1129
      %s1132 = sshll.u32 [#allocation17], 4
      %s1133 = int_to_ptr.vmem [resolvable:$true] %s1132
      %1135 = dma.vmem_to_hbm [thread:$0]  %s1133, 128, %s8, [#allocation16]
    $region65: #{tpu_custom_call.1} parent=1 // pred_fallthru
      _
    // Predicated region
    $region66: #{tpu_custom_call.1} parent=1 // pred_check
      _
    $region67: #{tpu_custom_call.1} parent=1 // pred_check_branch
      %1137 = sbr.rel (0) target = $region69
    $region68: #{tpu_custom_call.1} parent=1 // pred_region
      %1138 = dma.done [#allocation7], 512
    $region69: #{tpu_custom_call.1} parent=1 // pred_fallthru
      _
    // Predicated region
    $region70: #{tpu_custom_call.1} parent=1 // pred_check
      _
    $region71: #{tpu_custom_call.1} parent=1 // pred_check_branch
      %1140 = sbr.rel (0) target = $region73
    $region72: #{tpu_custom_call.1} parent=1 // pred_region
      %1141 = dma.done [#allocation16], 128
    $region73: #{tpu_custom_call.1} parent=1 // pred_fallthru
      _
    // Predicated region
    $region74: #{tpu_custom_call.1} parent=1 // pred_check
      _
    $region75: #{tpu_custom_call.1} parent=1 // pred_check_branch
      %1143 = sbr.rel (0) target = $region77
    $region76: #{tpu_custom_call.1} parent=1 // pred_region
      %1144 = dma.done [#allocation16], 128
    $region77: #{tpu_custom_call.1} parent=1 // pred_fallthru
      _
    %1145 = vsyncpa [#allocation6], 1
    %1146 = vsyncpa [#allocation9], 1
    %1147 = vsyncpa [#allocation12], 1
    %1148 = vsyncpa [#allocation7], 1
    %1149 = vsyncpa [#allocation16], 1

</llo_original>
